<compile_context>
chip_gen: v7x
topology: tpu7x:2x2x1
jax: 0.10.0
libtpu: 0.0.40
codegen_flags: <defaults>
</compile_context>

<pallas_src>
import functools

import jax
import jax.numpy as jnp
from jax.experimental import pallas as pl
from jax.experimental.pallas import tpu as pltpu

_BF16 = jnp.bfloat16
_F32 = jnp.float32
_ROW_ALIGN = 8  # sublane alignment for fp32 activations


def _round_up(x, m):
    return ((x + m - 1) // m) * m


# ----------------------------------------------------------------------------
# Fused kernel: both Q-heads (value branch + advantage branch for the real
# action and all noise samples) in one invocation.
# ----------------------------------------------------------------------------
def _critic_kernel(state_ref, act_ref,
                   wsT_ref, bs_ref, wva_ref, bva_ref,
                   wa1a_ref, wa2_ref, ba2_ref,
                   wv3_ref, wa3_ref, b3_ref,
                   *out_refs, n_tiles, num_sample, b_pad, with_mean):
    if with_mean:
        q_ref, mean_ref = out_refs
    else:
        (q_ref,) = out_refs

    state = state_ref[...]   # (B_pad, S)  bf16
    act = act_ref[...]       # (M, A)      bf16, M = n_tiles * B_pad

    for h in range(2):       # both Q-heads, unrolled
        # s = relu(state @ Ws^T + bs)
        s = jnp.maximum(
            jnp.dot(state, wsT_ref[h], preferred_element_type=_F32)
            + bs_ref[h], 0.0)

        # merged [Wv2^T | Wa1_s^T]: one (256, 512) matmul consumed by s
        vs = jnp.dot(s.astype(_BF16), wva_ref[h],
                     preferred_element_type=_F32) + bva_ref[h]
        vh = jnp.maximum(vs[:, :256], 0.0)   # value-branch hidden
        h1_s = vs[:, 256:]                   # sample-invariant a1 term (+ b_a1)

        # value head 256->1: VPU multiply + lane reduction (no padded matmul)
        v = jnp.sum(vh * wv3_ref[h], axis=-1, keepdims=True) + b3_ref[h, 0]

        # advantage branch on all rows (real action + all noise samples);
        # sample-invariant term replicated by a sublane-aligned layout copy.
        h1_bias = (jnp.concatenate([h1_s] * n_tiles, axis=0)
                   if n_tiles > 1 else h1_s)
        h1 = jnp.maximum(
            h1_bias + jnp.dot(act, wa1a_ref[h], preferred_element_type=_F32),
            0.0)
        h2 = jnp.maximum(
            jnp.dot(h1.astype(_BF16), wa2_ref[h], preferred_element_type=_F32)
            + ba2_ref[h], 0.0)

        wa3 = wa3_ref[h]                     # (1, 256) fp32
        a_real = (jnp.sum(h2[:b_pad] * wa3, axis=-1, keepdims=True)
                  + b3_ref[h, 1])
        q_ref[h] = a_real + v

        if with_mean:
            # a3 is affine => mean_i a3(h2_i) == a3(mean_i h2_i)
            acc = h2[b_pad:2 * b_pad]
            for smp in range(1, num_sample):
                acc = acc + h2[(smp + 1) * b_pad:(smp + 2) * b_pad]
            mh2 = acc * (1.0 / num_sample)
            mean_ref[h] = (jnp.sum(mh2 * wa3, axis=-1, keepdims=True)
                           + b3_ref[h, 1])


# ----------------------------------------------------------------------------
# Wrapper
# ----------------------------------------------------------------------------
_WEIGHT_NAMES = ("wsT", "bs", "wva", "bva", "wa1a", "wa2", "ba2",
                 "wv3", "wa3", "b3")


def _run_fused(packed, state_p, act_all, *, num_sample, b_pad, with_mean):
    n_tiles = act_all.shape[0] // b_pad
    weights = [packed[n] for n in _WEIGHT_NAMES]

    vmem = pl.BlockSpec(memory_space=pltpu.MemorySpace.VMEM)
    smem = pl.BlockSpec(memory_space=pltpu.MemorySpace.SMEM)
    # state, act, 9 VMEM weight slabs, b3 scalars in SMEM
    in_specs = [vmem] * (2 + len(weights) - 1) + [smem]

    out_shapes = [jax.ShapeDtypeStruct((2, b_pad, 1), _F32)]
    out_specs = [vmem]
    if with_mean:
        out_shapes.append(jax.ShapeDtypeStruct((2, b_pad, 1), _F32))
        out_specs.append(vmem)

    kernel = functools.partial(_critic_kernel, n_tiles=n_tiles,
                               num_sample=num_sample, b_pad=b_pad,
                               with_mean=with_mean)
    return pl.pallas_call(
        kernel,
        out_shape=tuple(out_shapes),
        in_specs=in_specs,
        out_specs=tuple(out_specs),
    )(state_p, act_all, *weights)


# ----------------------------------------------------------------------------
# Parameter construction (PyTorch-Linear-style init) + one-time packing
# ----------------------------------------------------------------------------
def _linear_params(key, in_dim, out_dim):
    bound = 1.0 / (in_dim ** 0.5)
    kw, kb = jax.random.split(key)
    w = jax.random.uniform(kw, (out_dim, in_dim), _F32, -bound, bound)
    b = jax.random.uniform(kb, (out_dim,), _F32, -bound, bound)
    return w, b


def make_critic_params(key, state_dim, action_dim):
    dims = {
        "s1": (state_dim, 256), "v2": (256, 256), "v3": (256, 1),
        "a1": (action_dim + 256, 256), "a2": (256, 256), "a3": (256, 1),
        "s4": (state_dim, 256), "v5": (256, 256), "v6": (256, 1),
        "a4": (action_dim + 256, 256), "a5": (256, 256), "a6": (256, 1),
    }
    names = list(dims)
    keys = jax.random.split(key, len(names))
    return {n: _linear_params(k, *dims[n]) for n, k in zip(names, keys)}


def pack_critic_params(params):
    """One-time transpose/split/concat/cast (NOT per call). Matmul weights are
    bf16 (fp32 accumulation in-kernel); biases and 256->1 head rows stay fp32."""
    def one_head(sn, v2n, v3n, a1n, a2n, a3n):
        ws, bs = params[sn]
        wv2, bv2 = params[v2n]
        wv3, bv3 = params[v3n]
        wa1, ba1 = params[a1n]
        wa2, ba2 = params[a2n]
        wa3, ba3 = params[a3n]
        wa1_s = wa1[:, :256]     # acts on s   (cat order is [s, action])
        wa1_a = wa1[:, 256:]     # acts on action
        return dict(
            wsT=ws.T.astype(_BF16),                                   # (S,256)
            bs=bs.reshape(1, -1),
            wva=jnp.concatenate([wv2.T, wa1_s.T], axis=1).astype(_BF16),  # (256,512)
            bva=jnp.concatenate([bv2, ba1]).reshape(1, -1),
            wa1a=wa1_a.T.astype(_BF16),                               # (A,256)
            wa2=wa2.T.astype(_BF16),                                  # (256,256)
            ba2=ba2.reshape(1, -1),
            wv3=wv3.reshape(1, -1),                                   # (1,256) f32
            wa3=wa3.reshape(1, -1),                                   # (1,256) f32
            b3=jnp.stack([bv3[0], ba3[0]]),                           # (2,)   f32
        )

    h0 = one_head("s1", "v2", "v3", "a1", "a2", "a3")
    h1 = one_head("s4", "v5", "v6", "a4", "a5", "a6")
    return {k: jnp.stack([h0[k], h1[k]], axis=0) for k in h0}


# ----------------------------------------------------------------------------
# Critic forward (matches the PyTorch module semantics)
# ----------------------------------------------------------------------------
def critic_forward(packed, state, action, compute_mean, mu, std, max_action,
                   num_sample, noise_key):
    B, A = action.shape
    b_pad = _round_up(B, _ROW_ALIGN)
    with_noise = bool(compute_mean) and num_sample > 0

    def pad_rows(x):
        return jnp.pad(x, ((0, b_pad - B), (0, 0)))

    if with_noise:
        # Normal(mu, std*max_action).rsample().clip(...) -- sampling is glue;
        # the per-sample MLP hot path runs inside the fused Pallas kernel.
        eps = jax.random.normal(noise_key, (num_sample, B, A), _F32)
        noise = jnp.clip(mu[None] + (std * max_action)[None] * eps,
                         -max_action, max_action)
        blocks = jnp.concatenate([action[None], noise], axis=0)   # (N+1,B,A)
        blocks = jnp.pad(blocks, ((0, 0), (0, b_pad - B), (0, 0)))
        act_all = blocks.reshape((num_sample + 1) * b_pad, A)
    else:
        noise = None
        act_all = pad_rows(action)

    state_p = pad_rows(state).astype(_BF16)
    act_all = act_all.astype(_BF16)

    outs = _run_fused(packed, state_p, act_all, num_sample=num_sample,
                      b_pad=b_pad, with_mean=with_noise)
    q_slab = outs[0]
    q1 = q_slab[0, :B, :]
    q2 = q_slab[1, :B, :]
    if with_noise:
        mean_slab = outs[1]
        mean1 = mean_slab[0, :B, :]
        mean2 = mean_slab[1, :B, :]
    else:
        mean1 = jnp.zeros((B, 1), _F32)
        mean2 = jnp.zeros((B, 1), _F32)
    return (q1, q2, mean1, mean2), noise


# ----------------------------------------------------------------------------
# Pure-JAX reference mirroring the kernel numerics (bf16 matmuls, fp32 accum,
# fp32 256->1 heads) for a tight silent correctness check.
# ----------------------------------------------------------------------------
def _ref_forward(params, state, action, noise, num_sample):
    def mm(x, w):  # bf16 matmul, fp32 accumulation (mirrors the kernel)
        return jnp.dot(x.astype(_BF16), w.T.astype(_BF16),
                       preferred_element_type=_F32)

    def lin(name, x):
        w, b = params[name]
        return mm(x, w) + b

    def head1(name, x):  # 256 -> 1 head, fp32 elementwise + reduce
        w, b = params[name]
        return jnp.sum(x * w.reshape(1, -1), axis=-1, keepdims=True) + b

    relu = jax.nn.relu
    s1 = relu(lin("s1", state))
    s2 = relu(lin("s4", state))
    v1 = head1("v3", relu(lin("v2", s1)))
    v2 = head1("v6", relu(lin("v5", s2)))

    def adv(p1, p2, p3, s, a):
        w1, b1 = params[p1]
        h = relu(mm(s, w1[:, :256]) + mm(a, w1[:, 256:]) + b1)
        h = relu(lin(p2, h))
        return head1(p3, h)

    a1 = adv("a1", "a2", "a3", s1, action)
    a2 = adv("a4", "a5", "a6", s2, action)
    mean1 = jnp.zeros_like(a1)
    mean2 = jnp.zeros_like(a2)
    if noise is not None:
        for i in range(num_sample):
            mean1 = mean1 + adv("a1", "a2", "a3", s1, noise[i]) / num_sample
            mean2 = mean2 + adv("a4", "a5", "a6", s2, noise[i]) / num_sample
    return a1 + v1, a2 + v2, mean1, mean2


# ----------------------------------------------------------------------------
if __name__ == "__main__":
    B = 2
    STATE_DIM = 16
    ACTION_DIM = 4
    NUM_SAMPLE = 4
    MAX_ACTION = 1.0

    root = jax.random.PRNGKey(0)
    k_params, k_state, k_action, k_mu, k_std, k_noise = jax.random.split(root, 6)

    params = make_critic_params(k_params, STATE_DIM, ACTION_DIM)
    packed = pack_critic_params(params)   # one-time packing (not per call)

    state = jax.random.normal(k_state, (B, STATE_DIM), _F32)
    action = jax.random.uniform(k_action, (B, ACTION_DIM), _F32,
                                -MAX_ACTION, MAX_ACTION)
    mu = jax.random.normal(k_mu, (B, ACTION_DIM), _F32) * 0.1
    std = jnp.abs(jax.random.normal(k_std, (B, ACTION_DIM), _F32)) * 0.2

    (q1, q2, mean1, mean2), noise = critic_forward(
        packed, state, action, compute_mean=True, mu=mu, std=std,
        max_action=MAX_ACTION, num_sample=NUM_SAMPLE, noise_key=k_noise)
    jax.block_until_ready((q1, q2, mean1, mean2))

    # silent correctness check against the bf16-mirrored pure-JAX reference
    rq1, rq2, rm1, rm2 = _ref_forward(params, state, action, noise, NUM_SAMPLE)
    assert jnp.allclose(q1, rq1, atol=2e-3, rtol=2e-3), "q1 mismatch"
    assert jnp.allclose(q2, rq2, atol=2e-3, rtol=2e-3), "q2 mismatch"
    assert jnp.allclose(mean1, rm1, atol=2e-3, rtol=2e-3), "mean1 mismatch"
    assert jnp.allclose(mean2, rm2, atol=2e-3, rtol=2e-3), "mean2 mismatch"

    # also exercise the specialized compute_mean=False path
    (q1b, q2b, m1b, m2b), _ = critic_forward(
        packed, state, action, compute_mean=False, mu=mu, std=std,
        max_action=MAX_ACTION, num_sample=NUM_SAMPLE, noise_key=k_noise)
    jax.block_until_ready((q1b, q2b, m1b, m2b))
    assert jnp.allclose(q1b, rq1, atol=2e-3, rtol=2e-3), "q1 (no-mean) mismatch"
    assert jnp.allclose(q2b, rq2, atol=2e-3, rtol=2e-3), "q2 (no-mean) mismatch"
    assert jnp.allclose(m1b, 0.0) and jnp.allclose(m2b, 0.0), "means not zero"

    print("KERNEL_OK")
</pallas_src>

<mosaic_0001>
module attributes {stable_mosaic.version = 11 : i64} {
  func.func @_critic_kernel(%arg0: memref<8x16xbf16, #tpu.memory_space<vmem>>, %arg1: memref<40x4xbf16, #tpu.memory_space<vmem>>, %arg2: memref<2x16x256xbf16, #tpu.memory_space<vmem>>, %arg3: memref<2x1x256xf32, #tpu.memory_space<vmem>>, %arg4: memref<2x256x512xbf16, #tpu.memory_space<vmem>>, %arg5: memref<2x1x512xf32, #tpu.memory_space<vmem>>, %arg6: memref<2x4x256xbf16, #tpu.memory_space<vmem>>, %arg7: memref<2x256x256xbf16, #tpu.memory_space<vmem>>, %arg8: memref<2x1x256xf32, #tpu.memory_space<vmem>>, %arg9: memref<2x1x256xf32, #tpu.memory_space<vmem>>, %arg10: memref<2x1x256xf32, #tpu.memory_space<vmem>>, %arg11: memref<2x2xf32, #tpu.memory_space<smem>>, %arg12: memref<2x8x1xf32, #tpu.memory_space<vmem>>, %arg13: memref<2x8x1xf32, #tpu.memory_space<vmem>>) attributes {dimension_semantics = [], scalar_prefetch = 0 : i64, scratch_operands = 0 : i64, tpu.core_type = #tpu.core_type<tc>} {
    %c0 = arith.constant 0 : index
    %c0_0 = arith.constant 0 : index
    %0 = vector.load %arg0[%c0, %c0_0] : memref<8x16xbf16, #tpu.memory_space<vmem>>, vector<8x16xbf16>
    %c0_1 = arith.constant 0 : index
    %c0_2 = arith.constant 0 : index
    %1 = vector.load %arg1[%c0_1, %c0_2] : memref<40x4xbf16, #tpu.memory_space<vmem>>, vector<40x4xbf16>
    %c0_3 = arith.constant 0 : index
    %c0_4 = arith.constant 0 : index
    %c0_5 = arith.constant 0 : index
    %2 = vector.load %arg2[%c0_3, %c0_4, %c0_5] : memref<2x16x256xbf16, #tpu.memory_space<vmem>>, vector<1x16x256xbf16>
    %3 = vector.shape_cast %2 : vector<1x16x256xbf16> to vector<16x256xbf16>
    %cst = arith.constant dense<0.000000e+00> : vector<8x256xf32>
    %4 = tpu.matmul %0, %3, %cst {dimension_numbers = #tpu.dot_dimension_numbers<[1], [0], [0], [1], [0, 0, 1, 1], [], []>} : vector<8x16xbf16>, vector<16x256xbf16>, vector<8x256xf32> -> vector<8x256xf32>
    %c0_6 = arith.constant 0 : index
    %c0_7 = arith.constant 0 : index
    %c0_8 = arith.constant 0 : index
    %5 = vector.load %arg3[%c0_6, %c0_7, %c0_8] : memref<2x1x256xf32, #tpu.memory_space<vmem>>, vector<1x1x256xf32>
    %6 = vector.shape_cast %5 : vector<1x1x256xf32> to vector<1x256xf32>
    %7 = vector.broadcast %6 : vector<1x256xf32> to vector<8x256xf32>
    %8 = arith.addf %4, %7 : vector<8x256xf32>
    %cst_9 = arith.constant 0.000000e+00 : f32
    %9 = vector.broadcast %cst_9 : f32 to vector<8x256xf32>
    %10 = arith.maximumf %8, %9 : vector<8x256xf32>
    %11 = arith.truncf %10 : vector<8x256xf32> to vector<8x256xbf16>
    %c0_10 = arith.constant 0 : index
    %c0_11 = arith.constant 0 : index
    %c0_12 = arith.constant 0 : index
    %12 = vector.load %arg4[%c0_10, %c0_11, %c0_12] : memref<2x256x512xbf16, #tpu.memory_space<vmem>>, vector<1x256x512xbf16>
    %13 = vector.shape_cast %12 : vector<1x256x512xbf16> to vector<256x512xbf16>
    %cst_13 = arith.constant dense<0.000000e+00> : vector<8x512xf32>
    %14 = tpu.matmul %11, %13, %cst_13 {dimension_numbers = #tpu.dot_dimension_numbers<[1], [0], [0], [1], [0, 0, 1, 1], [], []>} : vector<8x256xbf16>, vector<256x512xbf16>, vector<8x512xf32> -> vector<8x512xf32>
    %c0_14 = arith.constant 0 : index
    %c0_15 = arith.constant 0 : index
    %c0_16 = arith.constant 0 : index
    %15 = vector.load %arg5[%c0_14, %c0_15, %c0_16] : memref<2x1x512xf32, #tpu.memory_space<vmem>>, vector<1x1x512xf32>
    %16 = vector.shape_cast %15 : vector<1x1x512xf32> to vector<1x512xf32>
    %17 = vector.broadcast %16 : vector<1x512xf32> to vector<8x512xf32>
    %18 = arith.addf %14, %17 : vector<8x512xf32>
    %19 = vector.extract_strided_slice %18 {offsets = [0, 0], sizes = [8, 256], strides = [1, 1]} : vector<8x512xf32> to vector<8x256xf32>
    %cst_17 = arith.constant 0.000000e+00 : f32
    %20 = vector.broadcast %cst_17 : f32 to vector<8x256xf32>
    %21 = arith.maximumf %19, %20 : vector<8x256xf32>
    %22 = vector.extract_strided_slice %18 {offsets = [0, 256], sizes = [8, 256], strides = [1, 1]} : vector<8x512xf32> to vector<8x256xf32>
    %c0_18 = arith.constant 0 : index
    %c0_19 = arith.constant 0 : index
    %c0_20 = arith.constant 0 : index
    %23 = vector.load %arg9[%c0_18, %c0_19, %c0_20] : memref<2x1x256xf32, #tpu.memory_space<vmem>>, vector<1x1x256xf32>
    %24 = vector.shape_cast %23 : vector<1x1x256xf32> to vector<1x256xf32>
    %25 = vector.broadcast %24 : vector<1x256xf32> to vector<8x256xf32>
    %26 = arith.mulf %21, %25 : vector<8x256xf32>
    %cst_21 = arith.constant dense<0.000000e+00> : vector<8xf32>
    %27 = vector.multi_reduction <add>, %26, %cst_21 [1] : vector<8x256xf32> to vector<8xf32>
    %28 = vector.shape_cast %27 : vector<8xf32> to vector<8x1xf32>
    %c0_22 = arith.constant 0 : index
    %c0_23 = arith.constant 0 : index
    %29 = memref.load %arg11[%c0_22, %c0_23] : memref<2x2xf32, #tpu.memory_space<smem>>
    %30 = vector.broadcast %29 : f32 to vector<8x1xf32>
    %31 = arith.addf %28, %30 : vector<8x1xf32>
    %32 = tpu.concatenate %22, %22, %22, %22, %22 in 0 : vector<8x256xf32>, vector<8x256xf32>, vector<8x256xf32>, vector<8x256xf32>, vector<8x256xf32> -> vector<40x256xf32>
    %c0_24 = arith.constant 0 : index
    %c0_25 = arith.constant 0 : index
    %c0_26 = arith.constant 0 : index
    %33 = vector.load %arg6[%c0_24, %c0_25, %c0_26] : memref<2x4x256xbf16, #tpu.memory_space<vmem>>, vector<1x4x256xbf16>
    %34 = vector.shape_cast %33 : vector<1x4x256xbf16> to vector<4x256xbf16>
    %cst_27 = arith.constant dense<0.000000e+00> : vector<40x256xf32>
    %35 = tpu.matmul %1, %34, %cst_27 {dimension_numbers = #tpu.dot_dimension_numbers<[1], [0], [0], [1], [0, 0, 1, 1], [], []>} : vector<40x4xbf16>, vector<4x256xbf16>, vector<40x256xf32> -> vector<40x256xf32>
    %36 = arith.addf %32, %35 : vector<40x256xf32>
    %cst_28 = arith.constant 0.000000e+00 : f32
    %37 = vector.broadcast %cst_28 : f32 to vector<40x256xf32>
    %38 = arith.maximumf %36, %37 : vector<40x256xf32>
    %39 = arith.truncf %38 : vector<40x256xf32> to vector<40x256xbf16>
    %c0_29 = arith.constant 0 : index
    %c0_30 = arith.constant 0 : index
    %c0_31 = arith.constant 0 : index
    %40 = vector.load %arg7[%c0_29, %c0_30, %c0_31] : memref<2x256x256xbf16, #tpu.memory_space<vmem>>, vector<1x256x256xbf16>
    %41 = vector.shape_cast %40 : vector<1x256x256xbf16> to vector<256x256xbf16>
    %cst_32 = arith.constant dense<0.000000e+00> : vector<40x256xf32>
    %42 = tpu.matmul %39, %41, %cst_32 {dimension_numbers = #tpu.dot_dimension_numbers<[1], [0], [0], [1], [0, 0, 1, 1], [], []>} : vector<40x256xbf16>, vector<256x256xbf16>, vector<40x256xf32> -> vector<40x256xf32>
    %c0_33 = arith.constant 0 : index
    %c0_34 = arith.constant 0 : index
    %c0_35 = arith.constant 0 : index
    %43 = vector.load %arg8[%c0_33, %c0_34, %c0_35] : memref<2x1x256xf32, #tpu.memory_space<vmem>>, vector<1x1x256xf32>
    %44 = vector.shape_cast %43 : vector<1x1x256xf32> to vector<1x256xf32>
    %45 = vector.broadcast %44 : vector<1x256xf32> to vector<40x256xf32>
    %46 = arith.addf %42, %45 : vector<40x256xf32>
    %cst_36 = arith.constant 0.000000e+00 : f32
    %47 = vector.broadcast %cst_36 : f32 to vector<40x256xf32>
    %48 = arith.maximumf %46, %47 : vector<40x256xf32>
    %c0_37 = arith.constant 0 : index
    %c0_38 = arith.constant 0 : index
    %c0_39 = arith.constant 0 : index
    %49 = vector.load %arg10[%c0_37, %c0_38, %c0_39] : memref<2x1x256xf32, #tpu.memory_space<vmem>>, vector<1x1x256xf32>
    %50 = vector.shape_cast %49 : vector<1x1x256xf32> to vector<1x256xf32>
    %51 = vector.extract_strided_slice %48 {offsets = [0, 0], sizes = [8, 256], strides = [1, 1]} : vector<40x256xf32> to vector<8x256xf32>
    %52 = vector.broadcast %50 : vector<1x256xf32> to vector<8x256xf32>
    %53 = arith.mulf %51, %52 : vector<8x256xf32>
    %cst_40 = arith.constant dense<0.000000e+00> : vector<8xf32>
    %54 = vector.multi_reduction <add>, %53, %cst_40 [1] : vector<8x256xf32> to vector<8xf32>
    %55 = vector.shape_cast %54 : vector<8xf32> to vector<8x1xf32>
    %c0_41 = arith.constant 0 : index
    %c1 = arith.constant 1 : index
    %56 = memref.load %arg11[%c0_41, %c1] : memref<2x2xf32, #tpu.memory_space<smem>>
    %57 = vector.broadcast %56 : f32 to vector<8x1xf32>
    %58 = arith.addf %55, %57 : vector<8x1xf32>
    %59 = arith.addf %58, %31 : vector<8x1xf32>
    %c0_42 = arith.constant 0 : index
    %c0_43 = arith.constant 0 : index
    %c0_44 = arith.constant 0 : index
    %60 = vector.load %arg12[%c0_42, %c0_43, %c0_44] : memref<2x8x1xf32, #tpu.memory_space<vmem>>, vector<1x8x1xf32>
    %61 = vector.shape_cast %60 : vector<1x8x1xf32> to vector<8x1xf32>
    %62 = vector.shape_cast %59 : vector<8x1xf32> to vector<1x8x1xf32>
    tpu.vector_store %arg12[%c0_42, %c0_43, %c0_44], %62 {strides = array<i32>} : memref<2x8x1xf32, #tpu.memory_space<vmem>>, vector<1x8x1xf32>,
    %63 = vector.extract_strided_slice %48 {offsets = [8, 0], sizes = [8, 256], strides = [1, 1]} : vector<40x256xf32> to vector<8x256xf32>
    %64 = vector.extract_strided_slice %48 {offsets = [16, 0], sizes = [8, 256], strides = [1, 1]} : vector<40x256xf32> to vector<8x256xf32>
    %65 = arith.addf %63, %64 : vector<8x256xf32>
    %66 = vector.extract_strided_slice %48 {offsets = [24, 0], sizes = [8, 256], strides = [1, 1]} : vector<40x256xf32> to vector<8x256xf32>
    %67 = arith.addf %65, %66 : vector<8x256xf32>
    %68 = vector.extract_strided_slice %48 {offsets = [32, 0], sizes = [8, 256], strides = [1, 1]} : vector<40x256xf32> to vector<8x256xf32>
    %69 = arith.addf %67, %68 : vector<8x256xf32>
    %cst_45 = arith.constant 2.500000e-01 : f32
    %70 = vector.broadcast %cst_45 : f32 to vector<8x256xf32>
    %71 = arith.mulf %69, %70 : vector<8x256xf32>
    %72 = vector.broadcast %50 : vector<1x256xf32> to vector<8x256xf32>
    %73 = arith.mulf %71, %72 : vector<8x256xf32>
    %cst_46 = arith.constant dense<0.000000e+00> : vector<8xf32>
    %74 = vector.multi_reduction <add>, %73, %cst_46 [1] : vector<8x256xf32> to vector<8xf32>
    %75 = vector.shape_cast %74 : vector<8xf32> to vector<8x1xf32>
    %c0_47 = arith.constant 0 : index
    %c1_48 = arith.constant 1 : index
    %76 = memref.load %arg11[%c0_47, %c1_48] : memref<2x2xf32, #tpu.memory_space<smem>>
    %77 = vector.broadcast %76 : f32 to vector<8x1xf32>
    %78 = arith.addf %75, %77 : vector<8x1xf32>
    %c0_49 = arith.constant 0 : index
    %c0_50 = arith.constant 0 : index
    %c0_51 = arith.constant 0 : index
    %79 = vector.load %arg13[%c0_49, %c0_50, %c0_51] : memref<2x8x1xf32, #tpu.memory_space<vmem>>, vector<1x8x1xf32>
    %80 = vector.shape_cast %79 : vector<1x8x1xf32> to vector<8x1xf32>
    %81 = vector.shape_cast %78 : vector<8x1xf32> to vector<1x8x1xf32>
    tpu.vector_store %arg13[%c0_49, %c0_50, %c0_51], %81 {strides = array<i32>} : memref<2x8x1xf32, #tpu.memory_space<vmem>>, vector<1x8x1xf32>,
    %c1_52 = arith.constant 1 : index
    %c0_53 = arith.constant 0 : index
    %c0_54 = arith.constant 0 : index
    %82 = vector.load %arg2[%c1_52, %c0_53, %c0_54] : memref<2x16x256xbf16, #tpu.memory_space<vmem>>, vector<1x16x256xbf16>
    %83 = vector.shape_cast %82 : vector<1x16x256xbf16> to vector<16x256xbf16>
    %cst_55 = arith.constant dense<0.000000e+00> : vector<8x256xf32>
    %84 = tpu.matmul %0, %83, %cst_55 {dimension_numbers = #tpu.dot_dimension_numbers<[1], [0], [0], [1], [0, 0, 1, 1], [], []>} : vector<8x16xbf16>, vector<16x256xbf16>, vector<8x256xf32> -> vector<8x256xf32>
    %c1_56 = arith.constant 1 : index
    %c0_57 = arith.constant 0 : index
    %c0_58 = arith.constant 0 : index
    %85 = vector.load %arg3[%c1_56, %c0_57, %c0_58] : memref<2x1x256xf32, #tpu.memory_space<vmem>>, vector<1x1x256xf32>
    %86 = vector.shape_cast %85 : vector<1x1x256xf32> to vector<1x256xf32>
    %87 = vector.broadcast %86 : vector<1x256xf32> to vector<8x256xf32>
    %88 = arith.addf %84, %87 : vector<8x256xf32>
    %cst_59 = arith.constant 0.000000e+00 : f32
    %89 = vector.broadcast %cst_59 : f32 to vector<8x256xf32>
    %90 = arith.maximumf %88, %89 : vector<8x256xf32>
    %91 = arith.truncf %90 : vector<8x256xf32> to vector<8x256xbf16>
    %c1_60 = arith.constant 1 : index
    %c0_61 = arith.constant 0 : index
    %c0_62 = arith.constant 0 : index
    %92 = vector.load %arg4[%c1_60, %c0_61, %c0_62] : memref<2x256x512xbf16, #tpu.memory_space<vmem>>, vector<1x256x512xbf16>
    %93 = vector.shape_cast %92 : vector<1x256x512xbf16> to vector<256x512xbf16>
    %cst_63 = arith.constant dense<0.000000e+00> : vector<8x512xf32>
    %94 = tpu.matmul %91, %93, %cst_63 {dimension_numbers = #tpu.dot_dimension_numbers<[1], [0], [0], [1], [0, 0, 1, 1], [], []>} : vector<8x256xbf16>, vector<256x512xbf16>, vector<8x512xf32> -> vector<8x512xf32>
    %c1_64 = arith.constant 1 : index
    %c0_65 = arith.constant 0 : index
    %c0_66 = arith.constant 0 : index
    %95 = vector.load %arg5[%c1_64, %c0_65, %c0_66] : memref<2x1x512xf32, #tpu.memory_space<vmem>>, vector<1x1x512xf32>
    %96 = vector.shape_cast %95 : vector<1x1x512xf32> to vector<1x512xf32>
    %97 = vector.broadcast %96 : vector<1x512xf32> to vector<8x512xf32>
    %98 = arith.addf %94, %97 : vector<8x512xf32>
    %99 = vector.extract_strided_slice %98 {offsets = [0, 0], sizes = [8, 256], strides = [1, 1]} : vector<8x512xf32> to vector<8x256xf32>
    %cst_67 = arith.constant 0.000000e+00 : f32
    %100 = vector.broadcast %cst_67 : f32 to vector<8x256xf32>
    %101 = arith.maximumf %99, %100 : vector<8x256xf32>
    %102 = vector.extract_strided_slice %98 {offsets = [0, 256], sizes = [8, 256], strides = [1, 1]} : vector<8x512xf32> to vector<8x256xf32>
    %c1_68 = arith.constant 1 : index
    %c0_69 = arith.constant 0 : index
    %c0_70 = arith.constant 0 : index
    %103 = vector.load %arg9[%c1_68, %c0_69, %c0_70] : memref<2x1x256xf32, #tpu.memory_space<vmem>>, vector<1x1x256xf32>
    %104 = vector.shape_cast %103 : vector<1x1x256xf32> to vector<1x256xf32>
    %105 = vector.broadcast %104 : vector<1x256xf32> to vector<8x256xf32>
    %106 = arith.mulf %101, %105 : vector<8x256xf32>
    %cst_71 = arith.constant dense<0.000000e+00> : vector<8xf32>
    %107 = vector.multi_reduction <add>, %106, %cst_71 [1] : vector<8x256xf32> to vector<8xf32>
    %108 = vector.shape_cast %107 : vector<8xf32> to vector<8x1xf32>
    %c1_72 = arith.constant 1 : index
    %c0_73 = arith.constant 0 : index
    %109 = memref.load %arg11[%c1_72, %c0_73] : memref<2x2xf32, #tpu.memory_space<smem>>
    %110 = vector.broadcast %109 : f32 to vector<8x1xf32>
    %111 = arith.addf %108, %110 : vector<8x1xf32>
    %112 = tpu.concatenate %102, %102, %102, %102, %102 in 0 : vector<8x256xf32>, vector<8x256xf32>, vector<8x256xf32>, vector<8x256xf32>, vector<8x256xf32> -> vector<40x256xf32>
    %c1_74 = arith.constant 1 : index
    %c0_75 = arith.constant 0 : index
    %c0_76 = arith.constant 0 : index
    %113 = vector.load %arg6[%c1_74, %c0_75, %c0_76] : memref<2x4x256xbf16, #tpu.memory_space<vmem>>, vector<1x4x256xbf16>
    %114 = vector.shape_cast %113 : vector<1x4x256xbf16> to vector<4x256xbf16>
    %cst_77 = arith.constant dense<0.000000e+00> : vector<40x256xf32>
    %115 = tpu.matmul %1, %114, %cst_77 {dimension_numbers = #tpu.dot_dimension_numbers<[1], [0], [0], [1], [0, 0, 1, 1], [], []>} : vector<40x4xbf16>, vector<4x256xbf16>, vector<40x256xf32> -> vector<40x256xf32>
    %116 = arith.addf %112, %115 : vector<40x256xf32>
    %cst_78 = arith.constant 0.000000e+00 : f32
    %117 = vector.broadcast %cst_78 : f32 to vector<40x256xf32>
    %118 = arith.maximumf %116, %117 : vector<40x256xf32>
    %119 = arith.truncf %118 : vector<40x256xf32> to vector<40x256xbf16>
    %c1_79 = arith.constant 1 : index
    %c0_80 = arith.constant 0 : index
    %c0_81 = arith.constant 0 : index
    %120 = vector.load %arg7[%c1_79, %c0_80, %c0_81] : memref<2x256x256xbf16, #tpu.memory_space<vmem>>, vector<1x256x256xbf16>
    %121 = vector.shape_cast %120 : vector<1x256x256xbf16> to vector<256x256xbf16>
    %cst_82 = arith.constant dense<0.000000e+00> : vector<40x256xf32>
    %122 = tpu.matmul %119, %121, %cst_82 {dimension_numbers = #tpu.dot_dimension_numbers<[1], [0], [0], [1], [0, 0, 1, 1], [], []>} : vector<40x256xbf16>, vector<256x256xbf16>, vector<40x256xf32> -> vector<40x256xf32>
    %c1_83 = arith.constant 1 : index
    %c0_84 = arith.constant 0 : index
    %c0_85 = arith.constant 0 : index
    %123 = vector.load %arg8[%c1_83, %c0_84, %c0_85] : memref<2x1x256xf32, #tpu.memory_space<vmem>>, vector<1x1x256xf32>
    %124 = vector.shape_cast %123 : vector<1x1x256xf32> to vector<1x256xf32>
    %125 = vector.broadcast %124 : vector<1x256xf32> to vector<40x256xf32>
    %126 = arith.addf %122, %125 : vector<40x256xf32>
    %cst_86 = arith.constant 0.000000e+00 : f32
    %127 = vector.broadcast %cst_86 : f32 to vector<40x256xf32>
    %128 = arith.maximumf %126, %127 : vector<40x256xf32>
    %c1_87 = arith.constant 1 : index
    %c0_88 = arith.constant 0 : index
    %c0_89 = arith.constant 0 : index
    %129 = vector.load %arg10[%c1_87, %c0_88, %c0_89] : memref<2x1x256xf32, #tpu.memory_space<vmem>>, vector<1x1x256xf32>
    %130 = vector.shape_cast %129 : vector<1x1x256xf32> to vector<1x256xf32>
    %131 = vector.extract_strided_slice %128 {offsets = [0, 0], sizes = [8, 256], strides = [1, 1]} : vector<40x256xf32> to vector<8x256xf32>
    %132 = vector.broadcast %130 : vector<1x256xf32> to vector<8x256xf32>
    %133 = arith.mulf %131, %132 : vector<8x256xf32>
    %cst_90 = arith.constant dense<0.000000e+00> : vector<8xf32>
    %134 = vector.multi_reduction <add>, %133, %cst_90 [1] : vector<8x256xf32> to vector<8xf32>
    %135 = vector.shape_cast %134 : vector<8xf32> to vector<8x1xf32>
    %c1_91 = arith.constant 1 : index
    %c1_92 = arith.constant 1 : index
    %136 = memref.load %arg11[%c1_91, %c1_92] : memref<2x2xf32, #tpu.memory_space<smem>>
    %137 = vector.broadcast %136 : f32 to vector<8x1xf32>
    %138 = arith.addf %135, %137 : vector<8x1xf32>
    %139 = arith.addf %138, %111 : vector<8x1xf32>
    %c1_93 = arith.constant 1 : index
    %c0_94 = arith.constant 0 : index
    %c0_95 = arith.constant 0 : index
    %140 = vector.load %arg12[%c1_93, %c0_94, %c0_95] : memref<2x8x1xf32, #tpu.memory_space<vmem>>, vector<1x8x1xf32>
    %141 = vector.shape_cast %140 : vector<1x8x1xf32> to vector<8x1xf32>
    %142 = vector.shape_cast %139 : vector<8x1xf32> to vector<1x8x1xf32>
    tpu.vector_store %arg12[%c1_93, %c0_94, %c0_95], %142 {strides = array<i32>} : memref<2x8x1xf32, #tpu.memory_space<vmem>>, vector<1x8x1xf32>,
    %143 = vector.extract_strided_slice %128 {offsets = [8, 0], sizes = [8, 256], strides = [1, 1]} : vector<40x256xf32> to vector<8x256xf32>
    %144 = vector.extract_strided_slice %128 {offsets = [16, 0], sizes = [8, 256], strides = [1, 1]} : vector<40x256xf32> to vector<8x256xf32>
    %145 = arith.addf %143, %144 : vector<8x256xf32>
    %146 = vector.extract_strided_slice %128 {offsets = [24, 0], sizes = [8, 256], strides = [1, 1]} : vector<40x256xf32> to vector<8x256xf32>
    %147 = arith.addf %145, %146 : vector<8x256xf32>
    %148 = vector.extract_strided_slice %128 {offsets = [32, 0], sizes = [8, 256], strides = [1, 1]} : vector<40x256xf32> to vector<8x256xf32>
    %149 = arith.addf %147, %148 : vector<8x256xf32>
    %cst_96 = arith.constant 2.500000e-01 : f32
    %150 = vector.broadcast %cst_96 : f32 to vector<8x256xf32>
    %151 = arith.mulf %149, %150 : vector<8x256xf32>
    %152 = vector.broadcast %130 : vector<1x256xf32> to vector<8x256xf32>
    %153 = arith.mulf %151, %152 : vector<8x256xf32>
    %cst_97 = arith.constant dense<0.000000e+00> : vector<8xf32>
    %154 = vector.multi_reduction <add>, %153, %cst_97 [1] : vector<8x256xf32> to vector<8xf32>
    %155 = vector.shape_cast %154 : vector<8xf32> to vector<8x1xf32>
    %c1_98 = arith.constant 1 : index
    %c1_99 = arith.constant 1 : index
    %156 = memref.load %arg11[%c1_98, %c1_99] : memref<2x2xf32, #tpu.memory_space<smem>>
    %157 = vector.broadcast %156 : f32 to vector<8x1xf32>
    %158 = arith.addf %155, %157 : vector<8x1xf32>
    %c1_100 = arith.constant 1 : index
    %c0_101 = arith.constant 0 : index
    %c0_102 = arith.constant 0 : index
    %159 = vector.load %arg13[%c1_100, %c0_101, %c0_102] : memref<2x8x1xf32, #tpu.memory_space<vmem>>, vector<1x8x1xf32>
    %160 = vector.shape_cast %159 : vector<1x8x1xf32> to vector<8x1xf32>
    %161 = vector.shape_cast %158 : vector<8x1xf32> to vector<1x8x1xf32>
    tpu.vector_store %arg13[%c1_100, %c0_101, %c0_102], %161 {strides = array<i32>} : memref<2x8x1xf32, #tpu.memory_space<vmem>>, vector<1x8x1xf32>,
    return
  }
}

</mosaic_0001>

<llo_original>
// kernel: tpu_custom_call.1
$region0: #{tpu_custom_call.1}
  #allocation0 [shape = 'u32[]', space=smem, size = 0x4, offset = 0x4, fixed_abs, tag = 'smem constant byte address 0x4 - core index']
  #allocation1 [shape = 'u32[144,128]{1,0:T(1,128)}', space=vmem, size = 0x12000, scoped, tag = 'internal scratch']
  %s0 = inlined_call_operand.vmem [shape: bf16[8,16], index: 0, kind: input, shape index: {}]
  %s1 = inlined_call_operand.vmem [shape: bf16[40,4], index: 1, kind: input, shape index: {}]
  %s2 = inlined_call_operand.hbm [shape: bf16[2,16,256], index: 2, kind: input, shape index: {}]
  %s3 = inlined_call_operand.vmem [shape: f32[2,1,256], index: 3, kind: input, shape index: {}]
  %s4 = inlined_call_operand.hbm [shape: bf16[2,256,512], index: 4, kind: input, shape index: {}]
  %s5 = inlined_call_operand.vmem [shape: f32[2,1,512], index: 5, kind: input, shape index: {}]
  %s6 = inlined_call_operand.vmem [shape: bf16[2,4,256], index: 6, kind: input, shape index: {}]
  %s7 = inlined_call_operand.hbm [shape: bf16[2,256,256], index: 7, kind: input, shape index: {}]
  %s8 = inlined_call_operand.vmem [shape: f32[2,1,256], index: 8, kind: input, shape index: {}]
  %s9 = inlined_call_operand.vmem [shape: f32[2,1,256], index: 9, kind: input, shape index: {}]
  %s10 = inlined_call_operand.vmem [shape: f32[2,1,256], index: 10, kind: input, shape index: {}]
  %s11 = inlined_call_operand.vmem [shape: f32[2,2], index: 11, kind: input, shape index: {}]
  %s12 = inlined_call_operand.vmem [shape: f32[2,8,1], index: 12, kind: output, shape index: {0}]
  %s13 = inlined_call_operand.vmem [shape: f32[2,8,1], index: 13, kind: output, shape index: {1}]
  %14 = xla_tuple %s12, %s13
  %s15 = sld [smem:[#allocation0]]
  $region82: #{tpu_custom_call.1} parent=0
    _
  %s17 = ssub.s32 1, %s15
  %s18 = scalar_select 0, %s17, %s15
  $region1: #{tpu_custom_call.1} parent=0
    #allocation2 [shape = 'u8[16384]{0}', space=vmem, size = 0x4000, scoped, tag = 'input window, operand 2, single buffered']
    #allocation3 [shape = 's32[1]{0}', space=sflag, size = 0x4, scoped, tag = 'scoped memory for tpu_custom_call.1']
    #allocation4 [shape = 's32[1]{0}', space=sflag, size = 0x4, scoped, tag = 'scoped memory for tpu_custom_call.1']
    #allocation5 [shape = 'u8[524288]{0}', space=vmem, size = 0x80000, scoped, tag = 'input window, operand 4, single buffered']
    #allocation6 [shape = 's32[1]{0}', space=sflag, size = 0x4, scoped, tag = 'scoped memory for tpu_custom_call.1']
    #allocation7 [shape = 'u8[262144]{0}', space=vmem, size = 0x40000, scoped, tag = 'input window, operand 7, single buffered']
    #allocation8 [shape = 'u8[1024]{0}', space=smem, size = 0x400, scoped, tag = 'input window, operand 11, single buffered']
    %19 = vsyncpa [#allocation3], 0
    %20 = vsyncpa [#allocation6], 0
    %21 = vsyncpa [#allocation4], 0
    // Predicated region
    $region2: #{tpu_custom_call.1} parent=1 // pred_check
      _
    $region3: #{tpu_custom_call.1} parent=1 // pred_check_branch
      %23 = sbr.rel (0) target = $region5
    $region4: #{tpu_custom_call.1} parent=1 // pred_region
      _
    $region5: #{tpu_custom_call.1} parent=1 // pred_fallthru
      _
    // Predicated region
    $region6: #{tpu_custom_call.1} parent=1 // pred_check
      _
    $region7: #{tpu_custom_call.1} parent=1 // pred_check_branch
      %25 = sbr.rel (0) target = $region9
    $region8: #{tpu_custom_call.1} parent=1 // pred_region
      _
    $region9: #{tpu_custom_call.1} parent=1 // pred_fallthru
      _
    // Predicated region
    $region10: #{tpu_custom_call.1} parent=1 // pred_check
      _
    $region11: #{tpu_custom_call.1} parent=1 // pred_check_branch
      %27 = sbr.rel (0) target = $region13
    $region12: #{tpu_custom_call.1} parent=1 // pred_region
      %s29 = ssub.s32 512, 512
      %30 = vsyncadd [#allocation3], %s29
      %s31 = sshll.u32 [#allocation2], 4
      %s32 = int_to_ptr.vmem [resolvable:$true] %s31
      %37 = dma.hbm_to_vmem [thread:$0]  %s2, 512, %s32, [#allocation3], 128, 128, 8
    $region13: #{tpu_custom_call.1} parent=1 // pred_fallthru
      _
    // Predicated region
    $region14: #{tpu_custom_call.1} parent=1 // pred_check
      _
    $region15: #{tpu_custom_call.1} parent=1 // pred_check_branch
      %39 = sbr.rel (0) target = $region17
    $region16: #{tpu_custom_call.1} parent=1 // pred_region
      _
    $region17: #{tpu_custom_call.1} parent=1 // pred_fallthru
      _
    // Predicated region
    $region18: #{tpu_custom_call.1} parent=1 // pred_check
      _
    $region19: #{tpu_custom_call.1} parent=1 // pred_check_branch
      %41 = sbr.rel (0) target = $region21
    $region20: #{tpu_custom_call.1} parent=1 // pred_region
      %s43 = ssub.s32 16384, 16384
      %44 = vsyncadd [#allocation6], %s43
      %s45 = sshll.u32 [#allocation5], 4
      %s46 = int_to_ptr.vmem [resolvable:$true] %s45
      %51 = dma.hbm_to_vmem [thread:$0]  %s4, 16384, %s46, [#allocation6], 256, 256, 16
    $region21: #{tpu_custom_call.1} parent=1 // pred_fallthru
      _
    // Predicated region
    $region22: #{tpu_custom_call.1} parent=1 // pred_check
      _
    $region23: #{tpu_custom_call.1} parent=1 // pred_check_branch
      %53 = sbr.rel (0) target = $region25
    $region24: #{tpu_custom_call.1} parent=1 // pred_region
      _
    $region25: #{tpu_custom_call.1} parent=1 // pred_fallthru
      _
    // Predicated region
    $region26: #{tpu_custom_call.1} parent=1 // pred_check
      _
    $region27: #{tpu_custom_call.1} parent=1 // pred_check_branch
      %55 = sbr.rel (0) target = $region29
    $region28: #{tpu_custom_call.1} parent=1 // pred_region
      _
    $region29: #{tpu_custom_call.1} parent=1 // pred_fallthru
      _
    // Predicated region
    $region30: #{tpu_custom_call.1} parent=1 // pred_check
      _
    $region31: #{tpu_custom_call.1} parent=1 // pred_check_branch
      %57 = sbr.rel (0) target = $region33
    $region32: #{tpu_custom_call.1} parent=1 // pred_region
      %s59 = ssub.s32 8192, 8192
      %60 = vsyncadd [#allocation6], %s59
      %s61 = sshll.u32 [#allocation7], 4
      %s62 = int_to_ptr.vmem [resolvable:$true] %s61
      %67 = dma.hbm_to_vmem [thread:$0]  %s7, 8192, %s62, [#allocation6], 128, 128, 8
    $region33: #{tpu_custom_call.1} parent=1 // pred_fallthru
      _
    // Predicated region
    $region34: #{tpu_custom_call.1} parent=1 // pred_check
      _
    $region35: #{tpu_custom_call.1} parent=1 // pred_check_branch
      %69 = sbr.rel (0) target = $region37
    $region36: #{tpu_custom_call.1} parent=1 // pred_region
      _
    $region37: #{tpu_custom_call.1} parent=1 // pred_fallthru
      _
    // Predicated region
    $region38: #{tpu_custom_call.1} parent=1 // pred_check
      _
    $region39: #{tpu_custom_call.1} parent=1 // pred_check_branch
      %71 = sbr.rel (0) target = $region41
    $region40: #{tpu_custom_call.1} parent=1 // pred_region
      _
    $region41: #{tpu_custom_call.1} parent=1 // pred_fallthru
      _
    // Predicated region
    $region42: #{tpu_custom_call.1} parent=1 // pred_check
      _
    $region43: #{tpu_custom_call.1} parent=1 // pred_check_branch
      %73 = sbr.rel (0) target = $region45
    $region44: #{tpu_custom_call.1} parent=1 // pred_region
      _
    $region45: #{tpu_custom_call.1} parent=1 // pred_fallthru
      _
    // Predicated region
    $region46: #{tpu_custom_call.1} parent=1 // pred_check
      _
    $region47: #{tpu_custom_call.1} parent=1 // pred_check_branch
      %75 = sbr.rel (0) target = $region49
    $region48: #{tpu_custom_call.1} parent=1 // pred_region
      %s77 = ssub.s32 32, 32
      %78 = vsyncadd [#allocation4], %s77
      %s80 = sshll.u32 %s11, 4
      %s81 = int_to_ptr.vmem [resolvable:$true] %s80
      %83 = dma.vmem_to_smem %s81, 32, [#allocation8], [#allocation4]
    $region49: #{tpu_custom_call.1} parent=1 // pred_fallthru
      _
    // Predicated region
    $region50: #{tpu_custom_call.1} parent=1 // pred_check
      _
    $region51: #{tpu_custom_call.1} parent=1 // pred_check_branch
      %85 = sbr.rel (0) target = $region53
    $region52: #{tpu_custom_call.1} parent=1 // pred_region
      %86 = dma.done [#allocation3], 512
    $region53: #{tpu_custom_call.1} parent=1 // pred_fallthru
      _
    // Predicated region
    $region54: #{tpu_custom_call.1} parent=1 // pred_check
      _
    $region55: #{tpu_custom_call.1} parent=1 // pred_check_branch
      %88 = sbr.rel (0) target = $region57
    $region56: #{tpu_custom_call.1} parent=1 // pred_region
      %89 = dma.done [#allocation6], 16384
    $region57: #{tpu_custom_call.1} parent=1 // pred_fallthru
      _
    // Predicated region
    $region58: #{tpu_custom_call.1} parent=1 // pred_check
      _
    $region59: #{tpu_custom_call.1} parent=1 // pred_check_branch
      %91 = sbr.rel (0) target = $region61
    $region60: #{tpu_custom_call.1} parent=1 // pred_region
      %92 = dma.done [#allocation6], 8192
    $region61: #{tpu_custom_call.1} parent=1 // pred_fallthru
      _
    // Predicated region
    $region62: #{tpu_custom_call.1} parent=1 // pred_check
      _
    $region63: #{tpu_custom_call.1} parent=1 // pred_check_branch
      %94 = sbr.rel (0) target = $region65
    $region64: #{tpu_custom_call.1} parent=1 // pred_region
      %95 = dma.done [#allocation4], 32
    $region65: #{tpu_custom_call.1} parent=1 // pred_fallthru
      _
    %96 = sfence
    %v98 = vld [vmem:[%s0] sm:$0xf]
    %v99 = vld [vmem:[%s1] sm:$0xf]
    %v100 = vld [vmem:[%s1 + $0x4] sm:$0xf]
    %v101 = vld [vmem:[%s1 + $0x8] sm:$0xf]
    %v102 = vld [vmem:[%s1 + $0xc] sm:$0xf]
    %v103 = vld [vmem:[%s1 + $0x10] sm:$0xf]
    %v104 = vld [vmem:[#allocation2] sm:$0xff]
    %v105 = vld [vmem:[#allocation2 + $0x8] sm:$0xff]
    %v106 = vld [vmem:[%s3] sm:$0x3]
    %v108 = vlaneseq
    %v109 = vshrl.u32 %v108, 7
    %v110 = vsub.s32 0, %v109
    %v111 = vrot.slane %v106, %v110
    %v112 = vlaneseq
    %v113 = vshrl.u32 %v112, 7
    %v114 = vsub.s32 1, %v113
    %v115 = vrot.slane %v106, %v114
    %v120 = vunpack.c.l.b16 %v104
    %v121 = vunpack.c.h.b16 %v104
    %v122 = vunpack.c.l.b16 %v105
    %v123 = vunpack.c.h.b16 %v105
    %v124 = vpack.c.b16 %v122, %v120
    %v125 = vpack.c.b16 %v123, %v121
    %vm128 = vcmask 130048
    %v130 = vsel %vm128, %v98, 0
    %132 = vmatprep.subr.bf16.mxu0 %v125
    %133 = vmatpush1.bf16.msra.mxu0 %v124
    %134 = vmatprep.subr.bf16.mxu0 0
    %135 = vmatpush1.bf16.msra.mxu0 0
    %136 = vmatprep.subr.bf16.mxu0 0
    %137 = vmatpush1.bf16.msra.mxu0 0
    %138 = vmatprep.subr.bf16.mxu0 0
    %139 = vmatpush1.bf16.msra.mxu0 0
    %140 = vmatprep.subr.bf16.mxu0 0
    %141 = vmatpush1.bf16.msra.mxu0 0
    %142 = vmatprep.subr.bf16.mxu0 0
    %143 = vmatpush1.bf16.msra.mxu0 0
    %144 = vmatprep.subr.bf16.mxu0 0
    %145 = vmatpush1.bf16.msra.mxu0 0
    %146 = vmatprep.subr.bf16.mxu0 0
    %147 = vmatpush1.bf16.msra.mxu0 0
    %148 = vmatprep.subr.bf16.mxu0 0
    %149 = vmatpush1.bf16.msra.mxu0 0
    %150 = vmatprep.subr.bf16.mxu0 0
    %151 = vmatpush1.bf16.msra.mxu0 0
    %152 = vmatprep.subr.bf16.mxu0 0
    %153 = vmatpush1.bf16.msra.mxu0 0
    %154 = vmatprep.subr.bf16.mxu0 0
    %155 = vmatpush1.bf16.msra.mxu0 0
    %156 = vmatprep.subr.bf16.mxu0 0
    %157 = vmatpush1.bf16.msra.mxu0 0
    %158 = vmatprep.subr.bf16.mxu0 0
    %159 = vmatpush1.bf16.msra.mxu0 0
    %160 = vmatprep.subr.bf16.mxu0 0
    %161 = vmatpush1.bf16.msra.mxu0 0
    %162 = vmatprep.subr.bf16.mxu0 0
    %163 = vmatpush1.bf16.msra.mxu0 0
    %164 = vmatprep.mubr.bf16.mxu0 0
    %165 = vmatmul.mubr.bf16.gmra.mrb[0].mxu0 %v130
    %v166 = vpop.f32.mrb[0].mxu0
    %v167 = vadd.f32 %v111, %v166
    %v168 = vpop.f32.mrb[0].mxu0
    %v169 = vadd.f32 %v115, %v168
    %v170 = vpop.f32.mrb[0].mxu0
    %v171 = vpop.f32.mrb[0].mxu0
    %172 = vdwg.mxu0
    %v173 = vmax.f32 %v167, 0.0
    %v174 = vmax.f32 %v169, 0.0
    %v175 = vpack.c.bf16 %v173, %v173
    %v176 = vpack.c.bf16 %v174, %v174
    %v177 = vld [vmem:[#allocation5] sm:$0xff]
    %v178 = vld [vmem:[#allocation5 + $0x8] sm:$0xff]
    %v179 = vld [vmem:[#allocation5 + $0x10] sm:$0xff]
    %v180 = vld [vmem:[#allocation5 + $0x18] sm:$0xff]
    %v181 = vld [vmem:[#allocation5 + $0x20] sm:$0xff]
    %v182 = vld [vmem:[#allocation5 + $0x28] sm:$0xff]
    %v183 = vld [vmem:[#allocation5 + $0x30] sm:$0xff]
    %v184 = vld [vmem:[#allocation5 + $0x38] sm:$0xff]
    %v185 = vld [vmem:[#allocation5 + $0x40] sm:$0xff]
    %v186 = vld [vmem:[#allocation5 + $0x48] sm:$0xff]
    %v187 = vld [vmem:[#allocation5 + $0x50] sm:$0xff]
    %v188 = vld [vmem:[#allocation5 + $0x58] sm:$0xff]
    %v189 = vld [vmem:[#allocation5 + $0x60] sm:$0xff]
    %v190 = vld [vmem:[#allocation5 + $0x68] sm:$0xff]
    %v191 = vld [vmem:[#allocation5 + $0x70] sm:$0xff]
    %v192 = vld [vmem:[#allocation5 + $0x78] sm:$0xff]
    %v193 = vld [vmem:[#allocation5 + $0x80] sm:$0xff]
    %v194 = vld [vmem:[#allocation5 + $0x88] sm:$0xff]
    %v195 = vld [vmem:[#allocation5 + $0x90] sm:$0xff]
    %v196 = vld [vmem:[#allocation5 + $0x98] sm:$0xff]
    %v197 = vld [vmem:[#allocation5 + $0xa0] sm:$0xff]
    %v198 = vld [vmem:[#allocation5 + $0xa8] sm:$0xff]
    %v199 = vld [vmem:[#allocation5 + $0xb0] sm:$0xff]
    %v200 = vld [vmem:[#allocation5 + $0xb8] sm:$0xff]
    %v201 = vld [vmem:[#allocation5 + $0xc0] sm:$0xff]
    %v202 = vld [vmem:[#allocation5 + $0xc8] sm:$0xff]
    %v203 = vld [vmem:[#allocation5 + $0xd0] sm:$0xff]
    %v204 = vld [vmem:[#allocation5 + $0xd8] sm:$0xff]
    %v205 = vld [vmem:[#allocation5 + $0xe0] sm:$0xff]
    %v206 = vld [vmem:[#allocation5 + $0xe8] sm:$0xff]
    %v207 = vld [vmem:[#allocation5 + $0xf0] sm:$0xff]
    %v208 = vld [vmem:[#allocation5 + $0xf8] sm:$0xff]
    %v209 = vld [vmem:[#allocation5 + $0x100] sm:$0xff]
    %v210 = vld [vmem:[#allocation5 + $0x108] sm:$0xff]
    %v211 = vld [vmem:[#allocation5 + $0x110] sm:$0xff]
    %v212 = vld [vmem:[#allocation5 + $0x118] sm:$0xff]
    %v213 = vld [vmem:[#allocation5 + $0x120] sm:$0xff]
    %v214 = vld [vmem:[#allocation5 + $0x128] sm:$0xff]
    %v215 = vld [vmem:[#allocation5 + $0x130] sm:$0xff]
    %v216 = vld [vmem:[#allocation5 + $0x138] sm:$0xff]
    %v217 = vld [vmem:[#allocation5 + $0x140] sm:$0xff]
    %v218 = vld [vmem:[#allocation5 + $0x148] sm:$0xff]
    %v219 = vld [vmem:[#allocation5 + $0x150] sm:$0xff]
    %v220 = vld [vmem:[#allocation5 + $0x158] sm:$0xff]
    %v221 = vld [vmem:[#allocation5 + $0x160] sm:$0xff]
    %v222 = vld [vmem:[#allocation5 + $0x168] sm:$0xff]
    %v223 = vld [vmem:[#allocation5 + $0x170] sm:$0xff]
    %v224 = vld [vmem:[#allocation5 + $0x178] sm:$0xff]
    %v225 = vld [vmem:[#allocation5 + $0x180] sm:$0xff]
    %v226 = vld [vmem:[#allocation5 + $0x188] sm:$0xff]
    %v227 = vld [vmem:[#allocation5 + $0x190] sm:$0xff]
    %v228 = vld [vmem:[#allocation5 + $0x198] sm:$0xff]
    %v229 = vld [vmem:[#allocation5 + $0x1a0] sm:$0xff]
    %v230 = vld [vmem:[#allocation5 + $0x1a8] sm:$0xff]
    %v231 = vld [vmem:[#allocation5 + $0x1b0] sm:$0xff]
    %v232 = vld [vmem:[#allocation5 + $0x1b8] sm:$0xff]
    %v233 = vld [vmem:[#allocation5 + $0x1c0] sm:$0xff]
    %v234 = vld [vmem:[#allocation5 + $0x1c8] sm:$0xff]
    %v235 = vld [vmem:[#allocation5 + $0x1d0] sm:$0xff]
    %v236 = vld [vmem:[#allocation5 + $0x1d8] sm:$0xff]
    %v237 = vld [vmem:[#allocation5 + $0x1e0] sm:$0xff]
    %v238 = vld [vmem:[#allocation5 + $0x1e8] sm:$0xff]
    %v239 = vld [vmem:[#allocation5 + $0x1f0] sm:$0xff]
    %v240 = vld [vmem:[#allocation5 + $0x1f8] sm:$0xff]
    %v241 = vld [vmem:[%s5] sm:$0xf]
    %v243 = vlaneseq
    %v244 = vshrl.u32 %v243, 7
    %v245 = vsub.s32 0, %v244
    %v246 = vrot.slane %v241, %v245
    %v247 = vlaneseq
    %v248 = vshrl.u32 %v247, 7
    %v249 = vsub.s32 1, %v248
    %v250 = vrot.slane %v241, %v249
    %v251 = vlaneseq
    %v252 = vshrl.u32 %v251, 7
    %v253 = vsub.s32 2, %v252
    %v254 = vrot.slane %v241, %v253
    %v255 = vlaneseq
    %v256 = vshrl.u32 %v255, 7
    %v257 = vsub.s32 3, %v256
    %v258 = vrot.slane %v241, %v257
    %v327 = vunpack.c.l.b16 %v177
    %v328 = vunpack.c.h.b16 %v177
    %v329 = vunpack.c.l.b16 %v178
    %v330 = vunpack.c.h.b16 %v178
    %v331 = vunpack.c.l.b16 %v179
    %v332 = vunpack.c.h.b16 %v179
    %v333 = vunpack.c.l.b16 %v180
    %v334 = vunpack.c.h.b16 %v180
    %v335 = vunpack.c.l.b16 %v181
    %v336 = vunpack.c.h.b16 %v181
    %v337 = vunpack.c.l.b16 %v182
    %v338 = vunpack.c.h.b16 %v182
    %v339 = vunpack.c.l.b16 %v183
    %v340 = vunpack.c.h.b16 %v183
    %v341 = vunpack.c.l.b16 %v184
    %v342 = vunpack.c.h.b16 %v184
    %v343 = vunpack.c.l.b16 %v185
    %v344 = vunpack.c.h.b16 %v185
    %v345 = vunpack.c.l.b16 %v186
    %v346 = vunpack.c.h.b16 %v186
    %v347 = vunpack.c.l.b16 %v187
    %v348 = vunpack.c.h.b16 %v187
    %v349 = vunpack.c.l.b16 %v188
    %v350 = vunpack.c.h.b16 %v188
    %v351 = vunpack.c.l.b16 %v189
    %v352 = vunpack.c.h.b16 %v189
    %v353 = vunpack.c.l.b16 %v190
    %v354 = vunpack.c.h.b16 %v190
    %v355 = vunpack.c.l.b16 %v191
    %v356 = vunpack.c.h.b16 %v191
    %v357 = vunpack.c.l.b16 %v192
    %v358 = vunpack.c.h.b16 %v192
    %v359 = vunpack.c.l.b16 %v193
    %v360 = vunpack.c.h.b16 %v193
    %v361 = vunpack.c.l.b16 %v194
    %v362 = vunpack.c.h.b16 %v194
    %v363 = vunpack.c.l.b16 %v195
    %v364 = vunpack.c.h.b16 %v195
    %v365 = vunpack.c.l.b16 %v196
    %v366 = vunpack.c.h.b16 %v196
    %v367 = vunpack.c.l.b16 %v197
    %v368 = vunpack.c.h.b16 %v197
    %v369 = vunpack.c.l.b16 %v198
    %v370 = vunpack.c.h.b16 %v198
    %v371 = vunpack.c.l.b16 %v199
    %v372 = vunpack.c.h.b16 %v199
    %v373 = vunpack.c.l.b16 %v200
    %v374 = vunpack.c.h.b16 %v200
    %v375 = vunpack.c.l.b16 %v201
    %v376 = vunpack.c.h.b16 %v201
    %v377 = vunpack.c.l.b16 %v202
    %v378 = vunpack.c.h.b16 %v202
    %v379 = vunpack.c.l.b16 %v203
    %v380 = vunpack.c.h.b16 %v203
    %v381 = vunpack.c.l.b16 %v204
    %v382 = vunpack.c.h.b16 %v204
    %v383 = vunpack.c.l.b16 %v205
    %v384 = vunpack.c.h.b16 %v205
    %v385 = vunpack.c.l.b16 %v206
    %v386 = vunpack.c.h.b16 %v206
    %v387 = vunpack.c.l.b16 %v207
    %v388 = vunpack.c.h.b16 %v207
    %v389 = vunpack.c.l.b16 %v208
    %v390 = vunpack.c.h.b16 %v208
    %v391 = vunpack.c.l.b16 %v209
    %v392 = vunpack.c.h.b16 %v209
    %v393 = vunpack.c.l.b16 %v210
    %v394 = vunpack.c.h.b16 %v210
    %v395 = vunpack.c.l.b16 %v211
    %v396 = vunpack.c.h.b16 %v211
    %v397 = vunpack.c.l.b16 %v212
    %v398 = vunpack.c.h.b16 %v212
    %v399 = vunpack.c.l.b16 %v213
    %v400 = vunpack.c.h.b16 %v213
    %v401 = vunpack.c.l.b16 %v214
    %v402 = vunpack.c.h.b16 %v214
    %v403 = vunpack.c.l.b16 %v215
    %v404 = vunpack.c.h.b16 %v215
    %v405 = vunpack.c.l.b16 %v216
    %v406 = vunpack.c.h.b16 %v216
    %v407 = vunpack.c.l.b16 %v217
    %v408 = vunpack.c.h.b16 %v217
    %v409 = vunpack.c.l.b16 %v218
    %v410 = vunpack.c.h.b16 %v218
    %v411 = vunpack.c.l.b16 %v219
    %v412 = vunpack.c.h.b16 %v219
    %v413 = vunpack.c.l.b16 %v220
    %v414 = vunpack.c.h.b16 %v220
    %v415 = vunpack.c.l.b16 %v221
    %v416 = vunpack.c.h.b16 %v221
    %v417 = vunpack.c.l.b16 %v222
    %v418 = vunpack.c.h.b16 %v222
    %v419 = vunpack.c.l.b16 %v223
    %v420 = vunpack.c.h.b16 %v223
    %v421 = vunpack.c.l.b16 %v224
    %v422 = vunpack.c.h.b16 %v224
    %v423 = vunpack.c.l.b16 %v225
    %v424 = vunpack.c.h.b16 %v225
    %v425 = vunpack.c.l.b16 %v226
    %v426 = vunpack.c.h.b16 %v226
    %v427 = vunpack.c.l.b16 %v227
    %v428 = vunpack.c.h.b16 %v227
    %v429 = vunpack.c.l.b16 %v228
    %v430 = vunpack.c.h.b16 %v228
    %v431 = vunpack.c.l.b16 %v229
    %v432 = vunpack.c.h.b16 %v229
    %v433 = vunpack.c.l.b16 %v230
    %v434 = vunpack.c.h.b16 %v230
    %v435 = vunpack.c.l.b16 %v231
    %v436 = vunpack.c.h.b16 %v231
    %v437 = vunpack.c.l.b16 %v232
    %v438 = vunpack.c.h.b16 %v232
    %v439 = vunpack.c.l.b16 %v233
    %v440 = vunpack.c.h.b16 %v233
    %v441 = vunpack.c.l.b16 %v234
    %v442 = vunpack.c.h.b16 %v234
    %v443 = vunpack.c.l.b16 %v235
    %v444 = vunpack.c.h.b16 %v235
    %v445 = vunpack.c.l.b16 %v236
    %v446 = vunpack.c.h.b16 %v236
    %v447 = vunpack.c.l.b16 %v237
    %v448 = vunpack.c.h.b16 %v237
    %v449 = vunpack.c.l.b16 %v238
    %v450 = vunpack.c.h.b16 %v238
    %v451 = vunpack.c.l.b16 %v239
    %v452 = vunpack.c.h.b16 %v239
    %v453 = vunpack.c.l.b16 %v240
    %v454 = vunpack.c.h.b16 %v240
    %v455 = vpack.c.b16 %v331, %v327
    %v456 = vpack.c.b16 %v332, %v328
    %v457 = vpack.c.b16 %v333, %v329
    %v458 = vpack.c.b16 %v334, %v330
    %v459 = vpack.c.b16 %v339, %v335
    %v460 = vpack.c.b16 %v340, %v336
    %v461 = vpack.c.b16 %v341, %v337
    %v462 = vpack.c.b16 %v342, %v338
    %v463 = vpack.c.b16 %v347, %v343
    %v464 = vpack.c.b16 %v348, %v344
    %v465 = vpack.c.b16 %v349, %v345
    %v466 = vpack.c.b16 %v350, %v346
    %v467 = vpack.c.b16 %v355, %v351
    %v468 = vpack.c.b16 %v356, %v352
    %v469 = vpack.c.b16 %v357, %v353
    %v470 = vpack.c.b16 %v358, %v354
    %v471 = vpack.c.b16 %v363, %v359
    %v472 = vpack.c.b16 %v364, %v360
    %v473 = vpack.c.b16 %v365, %v361
    %v474 = vpack.c.b16 %v366, %v362
    %v475 = vpack.c.b16 %v371, %v367
    %v476 = vpack.c.b16 %v372, %v368
    %v477 = vpack.c.b16 %v373, %v369
    %v478 = vpack.c.b16 %v374, %v370
    %v479 = vpack.c.b16 %v379, %v375
    %v480 = vpack.c.b16 %v380, %v376
    %v481 = vpack.c.b16 %v381, %v377
    %v482 = vpack.c.b16 %v382, %v378
    %v483 = vpack.c.b16 %v387, %v383
    %v484 = vpack.c.b16 %v388, %v384
    %v485 = vpack.c.b16 %v389, %v385
    %v486 = vpack.c.b16 %v390, %v386
    %v487 = vpack.c.b16 %v395, %v391
    %v488 = vpack.c.b16 %v396, %v392
    %v489 = vpack.c.b16 %v397, %v393
    %v490 = vpack.c.b16 %v398, %v394
    %v491 = vpack.c.b16 %v403, %v399
    %v492 = vpack.c.b16 %v404, %v400
    %v493 = vpack.c.b16 %v405, %v401
    %v494 = vpack.c.b16 %v406, %v402
    %v495 = vpack.c.b16 %v411, %v407
    %v496 = vpack.c.b16 %v412, %v408
    %v497 = vpack.c.b16 %v413, %v409
    %v498 = vpack.c.b16 %v414, %v410
    %v499 = vpack.c.b16 %v419, %v415
    %v500 = vpack.c.b16 %v420, %v416
    %v501 = vpack.c.b16 %v421, %v417
    %v502 = vpack.c.b16 %v422, %v418
    %v503 = vpack.c.b16 %v427, %v423
    %v504 = vpack.c.b16 %v428, %v424
    %v505 = vpack.c.b16 %v429, %v425
    %v506 = vpack.c.b16 %v430, %v426
    %v507 = vpack.c.b16 %v435, %v431
    %v508 = vpack.c.b16 %v436, %v432
    %v509 = vpack.c.b16 %v437, %v433
    %v510 = vpack.c.b16 %v438, %v434
    %v511 = vpack.c.b16 %v443, %v439
    %v512 = vpack.c.b16 %v444, %v440
    %v513 = vpack.c.b16 %v445, %v441
    %v514 = vpack.c.b16 %v446, %v442
    %v515 = vpack.c.b16 %v451, %v447
    %v516 = vpack.c.b16 %v452, %v448
    %v517 = vpack.c.b16 %v453, %v449
    %v518 = vpack.c.b16 %v454, %v450
    %583 = vmatprep.subr.bf16.mxu0 %v456
    %584 = vmatpush1.bf16.msra.mxu0 %v455
    %585 = vmatprep.subr.bf16.mxu0 %v460
    %586 = vmatpush1.bf16.msra.mxu0 %v459
    %587 = vmatprep.subr.bf16.mxu0 %v464
    %588 = vmatpush1.bf16.msra.mxu0 %v463
    %589 = vmatprep.subr.bf16.mxu0 %v468
    %590 = vmatpush1.bf16.msra.mxu0 %v467
    %591 = vmatprep.subr.bf16.mxu0 %v472
    %592 = vmatpush1.bf16.msra.mxu0 %v471
    %593 = vmatprep.subr.bf16.mxu0 %v476
    %594 = vmatpush1.bf16.msra.mxu0 %v475
    %595 = vmatprep.subr.bf16.mxu0 %v480
    %596 = vmatpush1.bf16.msra.mxu0 %v479
    %597 = vmatprep.subr.bf16.mxu0 %v484
    %598 = vmatpush1.bf16.msra.mxu0 %v483
    %599 = vmatprep.subr.bf16.mxu0 %v488
    %600 = vmatpush1.bf16.msra.mxu0 %v487
    %601 = vmatprep.subr.bf16.mxu0 %v492
    %602 = vmatpush1.bf16.msra.mxu0 %v491
    %603 = vmatprep.subr.bf16.mxu0 %v496
    %604 = vmatpush1.bf16.msra.mxu0 %v495
    %605 = vmatprep.subr.bf16.mxu0 %v500
    %606 = vmatpush1.bf16.msra.mxu0 %v499
    %607 = vmatprep.subr.bf16.mxu0 %v504
    %608 = vmatpush1.bf16.msra.mxu0 %v503
    %609 = vmatprep.subr.bf16.mxu0 %v508
    %610 = vmatpush1.bf16.msra.mxu0 %v507
    %611 = vmatprep.subr.bf16.mxu0 %v512
    %612 = vmatpush1.bf16.msra.mxu0 %v511
    %613 = vmatprep.subr.bf16.mxu0 %v516
    %614 = vmatpush1.bf16.msra.mxu0 %v515
    %615 = vmatprep.mubr.bf16.mxu0 %v176
    %616 = vmatmul.mubr.bf16.gmra.mrb[0].mxu0 %v175
    %v617 = vpop.f32.mrb[0].mxu0
    %v618 = vadd.f32 %v246, %v617
    %v619 = vpop.f32.mrb[0].mxu0
    %v620 = vadd.f32 %v250, %v619
    %v621 = vpop.f32.mrb[0].mxu0
    %v622 = vpop.f32.mrb[0].mxu0
    %623 = vdwg.mxu0
    %624 = vmatprep.subr.bf16.mxu0 %v458
    %625 = vmatpush1.bf16.msra.mxu0 %v457
    %626 = vmatprep.subr.bf16.mxu0 %v462
    %627 = vmatpush1.bf16.msra.mxu0 %v461
    %628 = vmatprep.subr.bf16.mxu0 %v466
    %629 = vmatpush1.bf16.msra.mxu0 %v465
    %630 = vmatprep.subr.bf16.mxu0 %v470
    %631 = vmatpush1.bf16.msra.mxu0 %v469
    %632 = vmatprep.subr.bf16.mxu0 %v474
    %633 = vmatpush1.bf16.msra.mxu0 %v473
    %634 = vmatprep.subr.bf16.mxu0 %v478
    %635 = vmatpush1.bf16.msra.mxu0 %v477
    %636 = vmatprep.subr.bf16.mxu0 %v482
    %637 = vmatpush1.bf16.msra.mxu0 %v481
    %638 = vmatprep.subr.bf16.mxu0 %v486
    %639 = vmatpush1.bf16.msra.mxu0 %v485
    %640 = vmatprep.subr.bf16.mxu0 %v490
    %641 = vmatpush1.bf16.msra.mxu0 %v489
    %642 = vmatprep.subr.bf16.mxu0 %v494
    %643 = vmatpush1.bf16.msra.mxu0 %v493
    %644 = vmatprep.subr.bf16.mxu0 %v498
    %645 = vmatpush1.bf16.msra.mxu0 %v497
    %646 = vmatprep.subr.bf16.mxu0 %v502
    %647 = vmatpush1.bf16.msra.mxu0 %v501
    %648 = vmatprep.subr.bf16.mxu0 %v506
    %649 = vmatpush1.bf16.msra.mxu0 %v505
    %650 = vmatprep.subr.bf16.mxu0 %v510
    %651 = vmatpush1.bf16.msra.mxu0 %v509
    %652 = vmatprep.subr.bf16.mxu0 %v514
    %653 = vmatpush1.bf16.msra.mxu0 %v513
    %654 = vmatprep.subr.bf16.mxu0 %v518
    %655 = vmatpush1.bf16.msra.mxu0 %v517
    %656 = vmatprep.mubr.bf16.mxu0 %v176
    %657 = vmatmul.mubr.bf16.gmra.mrb[0].mxu0 %v175
    %v658 = vpop.f32.mrb[0].mxu0
    %v659 = vadd.f32 %v254, %v658
    %v660 = vpop.f32.mrb[0].mxu0
    %v661 = vadd.f32 %v258, %v660
    %v662 = vpop.f32.mrb[0].mxu0
    %v663 = vpop.f32.mrb[0].mxu0
    %664 = vdwg.mxu0
    %v665 = vmax.f32 %v618, 0.0
    %v666 = vmax.f32 %v620, 0.0
    %v667 = vld [vmem:[%s9] sm:$0x3]
    %v669 = vlaneseq
    %v670 = vshrl.u32 %v669, 7
    %v671 = vsub.s32 0, %v670
    %v672 = vrot.slane %v667, %v671
    %v673 = vlaneseq
    %v674 = vshrl.u32 %v673, 7
    %v675 = vsub.s32 1, %v674
    %v676 = vrot.slane %v667, %v675
    %v679 = vmul.f32 %v665, %v672
    %v680 = vmul.f32 %v666, %v676
    %v681 = vadd.f32 %v679, %v680
    %682 = vadd.xlane.f32.xlu0 %v681
    %v683 = vpop.xlane.xlu0 %682
    %s684 = sld [smem:[#allocation8]]
    %v685 = vstv %s684
    %v686 = vadd.f32 %v683, %v685
    %v687 = vld [vmem:[%s6] sm:$0xf]
    %v693 = vunpack.c.l.b16 %v99
    %v694 = vunpack.c.l.b16 %v100
    %v695 = vunpack.c.l.b16 %v101
    %v696 = vunpack.c.l.b16 %v102
    %v697 = vunpack.c.l.b16 %v103
    %v698 = vpack.c.b16 %v694, %v693
    %v699 = vpack.c.b16 %v696, %v695
    %v700 = vpack.c.b16 %v697, %v697
    %v703 = vunpack.c.l.s4 1983009808
    %v704 = vunpack.c.0.s8 %v703
    %v705 = vlaneseq
    %v706 = vshrl.u32 %v705, 7
    %v707 = vsub.s32 %v704, %v706
    %v708 = vrot.slane %v687, %v707
    %v709 = vcombine.high %v708, %v708
    %vm710 = vcmask 31744
    %v712 = vsel %vm710, %v698, 0
    %v715 = vsel %vm710, %v699, 0
    %v718 = vsel %vm710, %v700, 0
    %vm720 = vcmask 1041408
    %v722 = vsel %vm720, %v708, 0
    %v725 = vsel %vm720, %v709, 0
    %727 = vmatprep.subr.bf16.mxu0 %v725
    %728 = vmatpush1.bf16.msra.mxu0 %v722
    %729 = vmatprep.subr.bf16.mxu0 0
    %730 = vmatpush1.bf16.msra.mxu0 0
    %731 = vmatprep.subr.bf16.mxu0 0
    %732 = vmatpush1.bf16.msra.mxu0 0
    %733 = vmatprep.subr.bf16.mxu0 0
    %734 = vmatpush1.bf16.msra.mxu0 0
    %735 = vmatprep.subr.bf16.mxu0 0
    %736 = vmatpush1.bf16.msra.mxu0 0
    %737 = vmatprep.subr.bf16.mxu0 0
    %738 = vmatpush1.bf16.msra.mxu0 0
    %739 = vmatprep.subr.bf16.mxu0 0
    %740 = vmatpush1.bf16.msra.mxu0 0
    %741 = vmatprep.subr.bf16.mxu0 0
    %742 = vmatpush1.bf16.msra.mxu0 0
    %743 = vmatprep.subr.bf16.mxu0 0
    %744 = vmatpush1.bf16.msra.mxu0 0
    %745 = vmatprep.subr.bf16.mxu0 0
    %746 = vmatpush1.bf16.msra.mxu0 0
    %747 = vmatprep.subr.bf16.mxu0 0
    %748 = vmatpush1.bf16.msra.mxu0 0
    %749 = vmatprep.subr.bf16.mxu0 0
    %750 = vmatpush1.bf16.msra.mxu0 0
    %751 = vmatprep.subr.bf16.mxu0 0
    %752 = vmatpush1.bf16.msra.mxu0 0
    %753 = vmatprep.subr.bf16.mxu0 0
    %754 = vmatpush1.bf16.msra.mxu0 0
    %755 = vmatprep.subr.bf16.mxu0 0
    %756 = vmatpush1.bf16.msra.mxu0 0
    %757 = vmatprep.subr.bf16.mxu0 0
    %758 = vmatpush1.bf16.msra.mxu0 0
    %759 = vmatprep.mubr.bf16.mxu0 0
    %760 = vmatmul.mubr.bf16.gmra.mrb[0].mxu0 %v712
    %v761 = vpop.f32.mrb[0].mxu0
    %v762 = vadd.f32 0.0, %v761
    %v763 = vpop.f32.mrb[0].mxu0
    %v764 = vadd.f32 0.0, %v763
    %v765 = vpop.f32.mrb[0].mxu0
    %v766 = vadd.f32 0.0, %v765
    %v767 = vpop.f32.mrb[0].mxu0
    %v768 = vadd.f32 0.0, %v767
    %769 = vmatprep.mubr.bf16.mxu0 0
    %770 = vmatmul.mubr.bf16.gmra.mrb[0].mxu0 %v715
    %v771 = vpop.f32.mrb[0].mxu0
    %v772 = vadd.f32 0.0, %v771
    %v773 = vpop.f32.mrb[0].mxu0
    %v774 = vadd.f32 0.0, %v773
    %v775 = vpop.f32.mrb[0].mxu0
    %v776 = vadd.f32 0.0, %v775
    %v777 = vpop.f32.mrb[0].mxu0
    %v778 = vadd.f32 0.0, %v777
    %779 = vmatprep.mubr.bf16.mxu0 0
    %780 = vmatmul.mubr.bf16.gmra.mrb[0].mxu0 %v718
    %v781 = vpop.f32.mrb[0].mxu0
    %v782 = vadd.f32 0.0, %v781
    %v783 = vpop.f32.mrb[0].mxu0
    %v784 = vadd.f32 0.0, %v783
    %v785 = vpop.f32.mrb[0].mxu0
    %v786 = vpop.f32.mrb[0].mxu0
    %787 = vdwg.mxu0
    %v788 = vadd.f32 %v659, %v762
    %v789 = vadd.f32 %v661, %v764
    %v790 = vadd.f32 %v659, %v766
    %v791 = vadd.f32 %v661, %v768
    %v792 = vadd.f32 %v659, %v772
    %v793 = vadd.f32 %v661, %v774
    %v794 = vadd.f32 %v659, %v776
    %v795 = vadd.f32 %v661, %v778
    %v796 = vadd.f32 %v659, %v782
    %v797 = vadd.f32 %v661, %v784
    %v798 = vmax.f32 %v788, 0.0
    %v799 = vmax.f32 %v789, 0.0
    %v800 = vmax.f32 %v790, 0.0
    %v801 = vmax.f32 %v791, 0.0
    %v802 = vmax.f32 %v792, 0.0
    %v803 = vmax.f32 %v793, 0.0
    %v804 = vmax.f32 %v794, 0.0
    %v805 = vmax.f32 %v795, 0.0
    %v806 = vmax.f32 %v796, 0.0
    %v807 = vmax.f32 %v797, 0.0
    %v808 = vpack.c.bf16 %v800, %v798
    %v809 = vpack.c.bf16 %v801, %v799
    %v810 = vpack.c.bf16 %v804, %v802
    %v811 = vpack.c.bf16 %v805, %v803
    %v812 = vpack.c.bf16 %v806, %v806
    %v813 = vpack.c.bf16 %v807, %v807
    %v814 = vld [vmem:[#allocation7] sm:$0xff]
    %v815 = vld [vmem:[#allocation7 + $0x8] sm:$0xff]
    %v816 = vld [vmem:[#allocation7 + $0x10] sm:$0xff]
    %v817 = vld [vmem:[#allocation7 + $0x18] sm:$0xff]
    %v818 = vld [vmem:[#allocation7 + $0x20] sm:$0xff]
    %v819 = vld [vmem:[#allocation7 + $0x28] sm:$0xff]
    %v820 = vld [vmem:[#allocation7 + $0x30] sm:$0xff]
    %v821 = vld [vmem:[#allocation7 + $0x38] sm:$0xff]
    %v822 = vld [vmem:[#allocation7 + $0x40] sm:$0xff]
    %v823 = vld [vmem:[#allocation7 + $0x48] sm:$0xff]
    %v824 = vld [vmem:[#allocation7 + $0x50] sm:$0xff]
    %v825 = vld [vmem:[#allocation7 + $0x58] sm:$0xff]
    %v826 = vld [vmem:[#allocation7 + $0x60] sm:$0xff]
    %v827 = vld [vmem:[#allocation7 + $0x68] sm:$0xff]
    %v828 = vld [vmem:[#allocation7 + $0x70] sm:$0xff]
    %v829 = vld [vmem:[#allocation7 + $0x78] sm:$0xff]
    %v830 = vld [vmem:[#allocation7 + $0x80] sm:$0xff]
    %v831 = vld [vmem:[#allocation7 + $0x88] sm:$0xff]
    %v832 = vld [vmem:[#allocation7 + $0x90] sm:$0xff]
    %v833 = vld [vmem:[#allocation7 + $0x98] sm:$0xff]
    %v834 = vld [vmem:[#allocation7 + $0xa0] sm:$0xff]
    %v835 = vld [vmem:[#allocation7 + $0xa8] sm:$0xff]
    %v836 = vld [vmem:[#allocation7 + $0xb0] sm:$0xff]
    %v837 = vld [vmem:[#allocation7 + $0xb8] sm:$0xff]
    %v838 = vld [vmem:[#allocation7 + $0xc0] sm:$0xff]
    %v839 = vld [vmem:[#allocation7 + $0xc8] sm:$0xff]
    %v840 = vld [vmem:[#allocation7 + $0xd0] sm:$0xff]
    %v841 = vld [vmem:[#allocation7 + $0xd8] sm:$0xff]
    %v842 = vld [vmem:[#allocation7 + $0xe0] sm:$0xff]
    %v843 = vld [vmem:[#allocation7 + $0xe8] sm:$0xff]
    %v844 = vld [vmem:[#allocation7 + $0xf0] sm:$0xff]
    %v845 = vld [vmem:[#allocation7 + $0xf8] sm:$0xff]
    %v846 = vld [vmem:[%s8] sm:$0x3]
    %v848 = vlaneseq
    %v849 = vshrl.u32 %v848, 7
    %v850 = vsub.s32 0, %v849
    %v851 = vrot.slane %v846, %v850
    %v852 = vlaneseq
    %v853 = vshrl.u32 %v852, 7
    %v854 = vsub.s32 1, %v853
    %v855 = vrot.slane %v846, %v854
    %v890 = vunpack.c.l.b16 %v814
    %v891 = vunpack.c.h.b16 %v814
    %v892 = vunpack.c.l.b16 %v815
    %v893 = vunpack.c.h.b16 %v815
    %v894 = vunpack.c.l.b16 %v816
    %v895 = vunpack.c.h.b16 %v816
    %v896 = vunpack.c.l.b16 %v817
    %v897 = vunpack.c.h.b16 %v817
    %v898 = vunpack.c.l.b16 %v818
    %v899 = vunpack.c.h.b16 %v818
    %v900 = vunpack.c.l.b16 %v819
    %v901 = vunpack.c.h.b16 %v819
    %v902 = vunpack.c.l.b16 %v820
    %v903 = vunpack.c.h.b16 %v820
    %v904 = vunpack.c.l.b16 %v821
    %v905 = vunpack.c.h.b16 %v821
    %v906 = vunpack.c.l.b16 %v822
    %v907 = vunpack.c.h.b16 %v822
    %v908 = vunpack.c.l.b16 %v823
    %v909 = vunpack.c.h.b16 %v823
    %v910 = vunpack.c.l.b16 %v824
    %v911 = vunpack.c.h.b16 %v824
    %v912 = vunpack.c.l.b16 %v825
    %v913 = vunpack.c.h.b16 %v825
    %v914 = vunpack.c.l.b16 %v826
    %v915 = vunpack.c.h.b16 %v826
    %v916 = vunpack.c.l.b16 %v827
    %v917 = vunpack.c.h.b16 %v827
    %v918 = vunpack.c.l.b16 %v828
    %v919 = vunpack.c.h.b16 %v828
    %v920 = vunpack.c.l.b16 %v829
    %v921 = vunpack.c.h.b16 %v829
    %v922 = vunpack.c.l.b16 %v830
    %v923 = vunpack.c.h.b16 %v830
    %v924 = vunpack.c.l.b16 %v831
    %v925 = vunpack.c.h.b16 %v831
    %v926 = vunpack.c.l.b16 %v832
    %v927 = vunpack.c.h.b16 %v832
    %v928 = vunpack.c.l.b16 %v833
    %v929 = vunpack.c.h.b16 %v833
    %v930 = vunpack.c.l.b16 %v834
    %v931 = vunpack.c.h.b16 %v834
    %v932 = vunpack.c.l.b16 %v835
    %v933 = vunpack.c.h.b16 %v835
    %v934 = vunpack.c.l.b16 %v836
    %v935 = vunpack.c.h.b16 %v836
    %v936 = vunpack.c.l.b16 %v837
    %v937 = vunpack.c.h.b16 %v837
    %v938 = vunpack.c.l.b16 %v838
    %v939 = vunpack.c.h.b16 %v838
    %v940 = vunpack.c.l.b16 %v839
    %v941 = vunpack.c.h.b16 %v839
    %v942 = vunpack.c.l.b16 %v840
    %v943 = vunpack.c.h.b16 %v840
    %v944 = vunpack.c.l.b16 %v841
    %v945 = vunpack.c.h.b16 %v841
    %v946 = vunpack.c.l.b16 %v842
    %v947 = vunpack.c.h.b16 %v842
    %v948 = vunpack.c.l.b16 %v843
    %v949 = vunpack.c.h.b16 %v843
    %v950 = vunpack.c.l.b16 %v844
    %v951 = vunpack.c.h.b16 %v844
    %v952 = vunpack.c.l.b16 %v845
    %v953 = vunpack.c.h.b16 %v845
    %v954 = vpack.c.b16 %v892, %v890
    %v955 = vpack.c.b16 %v893, %v891
    %v956 = vpack.c.b16 %v896, %v894
    %v957 = vpack.c.b16 %v897, %v895
    %v958 = vpack.c.b16 %v900, %v898
    %v959 = vpack.c.b16 %v901, %v899
    %v960 = vpack.c.b16 %v904, %v902
    %v961 = vpack.c.b16 %v905, %v903
    %v962 = vpack.c.b16 %v908, %v906
    %v963 = vpack.c.b16 %v909, %v907
    %v964 = vpack.c.b16 %v912, %v910
    %v965 = vpack.c.b16 %v913, %v911
    %v966 = vpack.c.b16 %v916, %v914
    %v967 = vpack.c.b16 %v917, %v915
    %v968 = vpack.c.b16 %v920, %v918
    %v969 = vpack.c.b16 %v921, %v919
    %v970 = vpack.c.b16 %v924, %v922
    %v971 = vpack.c.b16 %v925, %v923
    %v972 = vpack.c.b16 %v928, %v926
    %v973 = vpack.c.b16 %v929, %v927
    %v974 = vpack.c.b16 %v932, %v930
    %v975 = vpack.c.b16 %v933, %v931
    %v976 = vpack.c.b16 %v936, %v934
    %v977 = vpack.c.b16 %v937, %v935
    %v978 = vpack.c.b16 %v940, %v938
    %v979 = vpack.c.b16 %v941, %v939
    %v980 = vpack.c.b16 %v944, %v942
    %v981 = vpack.c.b16 %v945, %v943
    %v982 = vpack.c.b16 %v948, %v946
    %v983 = vpack.c.b16 %v949, %v947
    %v984 = vpack.c.b16 %v952, %v950
    %v985 = vpack.c.b16 %v953, %v951
    %1018 = vmatprep.subr.bf16.mxu0 %v955
    %1019 = vmatpush1.bf16.msra.mxu0 %v954
    %1020 = vmatprep.subr.bf16.mxu0 %v957
    %1021 = vmatpush1.bf16.msra.mxu0 %v956
    %1022 = vmatprep.subr.bf16.mxu0 %v959
    %1023 = vmatpush1.bf16.msra.mxu0 %v958
    %1024 = vmatprep.subr.bf16.mxu0 %v961
    %1025 = vmatpush1.bf16.msra.mxu0 %v960
    %1026 = vmatprep.subr.bf16.mxu0 %v963
    %1027 = vmatpush1.bf16.msra.mxu0 %v962
    %1028 = vmatprep.subr.bf16.mxu0 %v965
    %1029 = vmatpush1.bf16.msra.mxu0 %v964
    %1030 = vmatprep.subr.bf16.mxu0 %v967
    %1031 = vmatpush1.bf16.msra.mxu0 %v966
    %1032 = vmatprep.subr.bf16.mxu0 %v969
    %1033 = vmatpush1.bf16.msra.mxu0 %v968
    %1034 = vmatprep.subr.bf16.mxu0 %v971
    %1035 = vmatpush1.bf16.msra.mxu0 %v970
    %1036 = vmatprep.subr.bf16.mxu0 %v973
    %1037 = vmatpush1.bf16.msra.mxu0 %v972
    %1038 = vmatprep.subr.bf16.mxu0 %v975
    %1039 = vmatpush1.bf16.msra.mxu0 %v974
    %1040 = vmatprep.subr.bf16.mxu0 %v977
    %1041 = vmatpush1.bf16.msra.mxu0 %v976
    %1042 = vmatprep.subr.bf16.mxu0 %v979
    %1043 = vmatpush1.bf16.msra.mxu0 %v978
    %1044 = vmatprep.subr.bf16.mxu0 %v981
    %1045 = vmatpush1.bf16.msra.mxu0 %v980
    %1046 = vmatprep.subr.bf16.mxu0 %v983
    %1047 = vmatpush1.bf16.msra.mxu0 %v982
    %1048 = vmatprep.subr.bf16.mxu0 %v985
    %1049 = vmatpush1.bf16.msra.mxu0 %v984
    %1050 = vmatprep.mubr.bf16.mxu0 %v809
    %1051 = vmatmul.mubr.bf16.gmra.mrb[0].mxu0 %v808
    %v1052 = vpop.f32.mrb[0].mxu0
    %v1053 = vadd.f32 %v851, %v1052
    %v1054 = vpop.f32.mrb[0].mxu0
    %v1055 = vadd.f32 %v855, %v1054
    %v1056 = vpop.f32.mrb[0].mxu0
    %v1057 = vadd.f32 %v851, %v1056
    %v1058 = vpop.f32.mrb[0].mxu0
    %v1059 = vadd.f32 %v855, %v1058
    %1060 = vmatprep.mubr.bf16.mxu0 %v811
    %1061 = vmatmul.mubr.bf16.gmra.mrb[0].mxu0 %v810
    %v1062 = vpop.f32.mrb[0].mxu0
    %v1063 = vadd.f32 %v851, %v1062
    %v1064 = vpop.f32.mrb[0].mxu0
    %v1065 = vadd.f32 %v855, %v1064
    %v1066 = vpop.f32.mrb[0].mxu0
    %v1067 = vadd.f32 %v851, %v1066
    %v1068 = vpop.f32.mrb[0].mxu0
    %v1069 = vadd.f32 %v855, %v1068
    %1070 = vmatprep.mubr.bf16.mxu0 %v813
    %1071 = vmatmul.mubr.bf16.gmra.mrb[0].mxu0 %v812
    %v1072 = vpop.f32.mrb[0].mxu0
    %v1073 = vadd.f32 %v851, %v1072
    %v1074 = vpop.f32.mrb[0].mxu0
    %v1075 = vadd.f32 %v855, %v1074
    %v1076 = vpop.f32.mrb[0].mxu0
    %v1077 = vpop.f32.mrb[0].mxu0
    %1078 = vdwg.mxu0
    %v1079 = vmax.f32 %v1053, 0.0
    %v1080 = vmax.f32 %v1055, 0.0
    %v1081 = vmax.f32 %v1057, 0.0
    %v1082 = vmax.f32 %v1059, 0.0
    %v1083 = vmax.f32 %v1063, 0.0
    %v1084 = vmax.f32 %v1065, 0.0
    %v1085 = vmax.f32 %v1067, 0.0
    %v1086 = vmax.f32 %v1069, 0.0
    %v1087 = vmax.f32 %v1073, 0.0
    %v1088 = vmax.f32 %v1075, 0.0
    %v1089 = vld [vmem:[%s10] sm:$0x3]
    %v1091 = vlaneseq
    %v1092 = vshrl.u32 %v1091, 7
    %v1093 = vsub.s32 0, %v1092
    %v1094 = vrot.slane %v1089, %v1093
    %v1095 = vlaneseq
    %v1096 = vshrl.u32 %v1095, 7
    %v1097 = vsub.s32 1, %v1096
    %v1098 = vrot.slane %v1089, %v1097
    %v1101 = vmul.f32 %v1079, %v1094
    %v1102 = vmul.f32 %v1080, %v1098
    %v1103 = vadd.f32 %v1101, %v1102
    %1104 = vadd.xlane.f32.xlu0 %v1103
    %v1105 = vpop.xlane.xlu0 %1104
    %s1106 = sld [smem:[#allocation8 + $0x1]]
    %v1107 = vstv %s1106
    %v1108 = vadd.f32 %v1105, %v1107
    %v1109 = vadd.f32 %v1108, %v686
    %vm1110 = vcmask 7168
    %1111 = vst.msk [vmem:[%s12] sm:$0xff] %vm1110, %v1109
    %v1112 = vadd.f32 %v1081, %v1083
    %v1113 = vadd.f32 %v1082, %v1084
    %v1114 = vadd.f32 %v1112, %v1085
    %v1115 = vadd.f32 %v1113, %v1086
    %v1116 = vadd.f32 %v1114, %v1087
    %v1117 = vadd.f32 %v1115, %v1088
    %v1118 = vmul.f32 %v1116, 0.25
    %v1119 = vmul.f32 %v1117, 0.25
    %v1120 = vmul.f32 %v1118, %v1094
    %v1121 = vmul.f32 %v1119, %v1098
    %v1122 = vadd.f32 %v1120, %v1121
    %1123 = vadd.xlane.f32.xlu0 %v1122
    %v1124 = vpop.xlane.xlu0 %1123
    %s1125 = sld [smem:[#allocation8 + $0x1]]
    %v1126 = vstv %s1125
    %v1127 = vadd.f32 %v1124, %v1126
    %1128 = vst.msk [vmem:[%s13] sm:$0xff] %vm1110, %v1127
    %s1129 = scalar_lea.vmem [#allocation2], 16
    %v1130 = vld [vmem:[%s1129] sm:$0xff]
    %v1131 = vld [vmem:[%s1129 + $0x8] sm:$0xff]
    %s1132 = scalar_lea.vmem %s3, 2
    %v1133 = vld [vmem:[%s1132] sm:$0x3]
    %v1135 = vlaneseq
    %v1136 = vshrl.u32 %v1135, 7
    %v1137 = vsub.s32 0, %v1136
    %v1138 = vrot.slane %v1133, %v1137
    %v1139 = vlaneseq
    %v1140 = vshrl.u32 %v1139, 7
    %v1141 = vsub.s32 1, %v1140
    %v1142 = vrot.slane %v1133, %v1141
    %v1147 = vunpack.c.l.b16 %v1130
    %v1148 = vunpack.c.h.b16 %v1130
    %v1149 = vunpack.c.l.b16 %v1131
    %v1150 = vunpack.c.h.b16 %v1131
    %v1151 = vpack.c.b16 %v1149, %v1147
    %v1152 = vpack.c.b16 %v1150, %v1148
    %1155 = vmatprep.subr.bf16.mxu0 %v1152
    %1156 = vmatpush1.bf16.msra.mxu0 %v1151
    %1157 = vmatprep.subr.bf16.mxu0 0
    %1158 = vmatpush1.bf16.msra.mxu0 0
    %1159 = vmatprep.subr.bf16.mxu0 0
    %1160 = vmatpush1.bf16.msra.mxu0 0
    %1161 = vmatprep.subr.bf16.mxu0 0
    %1162 = vmatpush1.bf16.msra.mxu0 0
    %1163 = vmatprep.subr.bf16.mxu0 0
    %1164 = vmatpush1.bf16.msra.mxu0 0
    %1165 = vmatprep.subr.bf16.mxu0 0
    %1166 = vmatpush1.bf16.msra.mxu0 0
    %1167 = vmatprep.subr.bf16.mxu0 0
    %1168 = vmatpush1.bf16.msra.mxu0 0
    %1169 = vmatprep.subr.bf16.mxu0 0
    %1170 = vmatpush1.bf16.msra.mxu0 0
    %1171 = vmatprep.subr.bf16.mxu0 0
    %1172 = vmatpush1.bf16.msra.mxu0 0
    %1173 = vmatprep.subr.bf16.mxu0 0
    %1174 = vmatpush1.bf16.msra.mxu0 0
    %1175 = vmatprep.subr.bf16.mxu0 0
    %1176 = vmatpush1.bf16.msra.mxu0 0
    %1177 = vmatprep.subr.bf16.mxu0 0
    %1178 = vmatpush1.bf16.msra.mxu0 0
    %1179 = vmatprep.subr.bf16.mxu0 0
    %1180 = vmatpush1.bf16.msra.mxu0 0
    %1181 = vmatprep.subr.bf16.mxu0 0
    %1182 = vmatpush1.bf16.msra.mxu0 0
    %1183 = vmatprep.subr.bf16.mxu0 0
    %1184 = vmatpush1.bf16.msra.mxu0 0
    %1185 = vmatprep.subr.bf16.mxu0 0
    %1186 = vmatpush1.bf16.msra.mxu0 0
    %1187 = vmatprep.mubr.bf16.mxu0 0
    %1188 = vmatmul.mubr.bf16.gmra.mrb[0].mxu0 %v130
    %v1189 = vpop.f32.mrb[0].mxu0
    %v1190 = vadd.f32 %v1138, %v1189
    %v1191 = vpop.f32.mrb[0].mxu0
    %v1192 = vadd.f32 %v1142, %v1191
    %v1193 = vpop.f32.mrb[0].mxu0
    %v1194 = vpop.f32.mrb[0].mxu0
    %1195 = vdwg.mxu0
    %v1196 = vmax.f32 %v1190, 0.0
    %v1197 = vmax.f32 %v1192, 0.0
    %v1198 = vpack.c.bf16 %v1196, %v1196
    %v1199 = vpack.c.bf16 %v1197, %v1197
    %s1200 = scalar_lea.vmem [#allocation5], 512
    %v1201 = vld [vmem:[%s1200] sm:$0xff]
    %v1202 = vld [vmem:[%s1200 + $0x8] sm:$0xff]
    %v1203 = vld [vmem:[%s1200 + $0x10] sm:$0xff]
    %v1204 = vld [vmem:[%s1200 + $0x18] sm:$0xff]
    %v1205 = vld [vmem:[%s1200 + $0x20] sm:$0xff]
    %v1206 = vld [vmem:[%s1200 + $0x28] sm:$0xff]
    %v1207 = vld [vmem:[%s1200 + $0x30] sm:$0xff]
    %v1208 = vld [vmem:[%s1200 + $0x38] sm:$0xff]
    %v1209 = vld [vmem:[%s1200 + $0x40] sm:$0xff]
    %v1210 = vld [vmem:[%s1200 + $0x48] sm:$0xff]
    %v1211 = vld [vmem:[%s1200 + $0x50] sm:$0xff]
    %v1212 = vld [vmem:[%s1200 + $0x58] sm:$0xff]
    %v1213 = vld [vmem:[%s1200 + $0x60] sm:$0xff]
    %v1214 = vld [vmem:[%s1200 + $0x68] sm:$0xff]
    %v1215 = vld [vmem:[%s1200 + $0x70] sm:$0xff]
    %v1216 = vld [vmem:[%s1200 + $0x78] sm:$0xff]
    %v1217 = vld [vmem:[%s1200 + $0x80] sm:$0xff]
    %v1218 = vld [vmem:[%s1200 + $0x88] sm:$0xff]
    %v1219 = vld [vmem:[%s1200 + $0x90] sm:$0xff]
    %v1220 = vld [vmem:[%s1200 + $0x98] sm:$0xff]
    %v1221 = vld [vmem:[%s1200 + $0xa0] sm:$0xff]
    %v1222 = vld [vmem:[%s1200 + $0xa8] sm:$0xff]
    %v1223 = vld [vmem:[%s1200 + $0xb0] sm:$0xff]
    %v1224 = vld [vmem:[%s1200 + $0xb8] sm:$0xff]
    %v1225 = vld [vmem:[%s1200 + $0xc0] sm:$0xff]
    %v1226 = vld [vmem:[%s1200 + $0xc8] sm:$0xff]
    %v1227 = vld [vmem:[%s1200 + $0xd0] sm:$0xff]
    %v1228 = vld [vmem:[%s1200 + $0xd8] sm:$0xff]
    %v1229 = vld [vmem:[%s1200 + $0xe0] sm:$0xff]
    %v1230 = vld [vmem:[%s1200 + $0xe8] sm:$0xff]
    %v1231 = vld [vmem:[%s1200 + $0xf0] sm:$0xff]
    %v1232 = vld [vmem:[%s1200 + $0xf8] sm:$0xff]
    %v1233 = vld [vmem:[%s1200 + $0x100] sm:$0xff]
    %v1234 = vld [vmem:[%s1200 + $0x108] sm:$0xff]
    %v1235 = vld [vmem:[%s1200 + $0x110] sm:$0xff]
    %v1236 = vld [vmem:[%s1200 + $0x118] sm:$0xff]
    %v1237 = vld [vmem:[%s1200 + $0x120] sm:$0xff]
    %v1238 = vld [vmem:[%s1200 + $0x128] sm:$0xff]
    %v1239 = vld [vmem:[%s1200 + $0x130] sm:$0xff]
    %v1240 = vld [vmem:[%s1200 + $0x138] sm:$0xff]
    %v1241 = vld [vmem:[%s1200 + $0x140] sm:$0xff]
    %v1242 = vld [vmem:[%s1200 + $0x148] sm:$0xff]
    %v1243 = vld [vmem:[%s1200 + $0x150] sm:$0xff]
    %v1244 = vld [vmem:[%s1200 + $0x158] sm:$0xff]
    %v1245 = vld [vmem:[%s1200 + $0x160] sm:$0xff]
    %v1246 = vld [vmem:[%s1200 + $0x168] sm:$0xff]
    %v1247 = vld [vmem:[%s1200 + $0x170] sm:$0xff]
    %v1248 = vld [vmem:[%s1200 + $0x178] sm:$0xff]
    %v1249 = vld [vmem:[%s1200 + $0x180] sm:$0xff]
    %v1250 = vld [vmem:[%s1200 + $0x188] sm:$0xff]
    %v1251 = vld [vmem:[%s1200 + $0x190] sm:$0xff]
    %v1252 = vld [vmem:[%s1200 + $0x198] sm:$0xff]
    %v1253 = vld [vmem:[%s1200 + $0x1a0] sm:$0xff]
    %v1254 = vld [vmem:[%s1200 + $0x1a8] sm:$0xff]
    %v1255 = vld [vmem:[%s1200 + $0x1b0] sm:$0xff]
    %v1256 = vld [vmem:[%s1200 + $0x1b8] sm:$0xff]
    %v1257 = vld [vmem:[%s1200 + $0x1c0] sm:$0xff]
    %v1258 = vld [vmem:[%s1200 + $0x1c8] sm:$0xff]
    %v1259 = vld [vmem:[%s1200 + $0x1d0] sm:$0xff]
    %v1260 = vld [vmem:[%s1200 + $0x1d8] sm:$0xff]
    %v1261 = vld [vmem:[%s1200 + $0x1e0] sm:$0xff]
    %v1262 = vld [vmem:[%s1200 + $0x1e8] sm:$0xff]
    %v1263 = vld [vmem:[%s1200 + $0x1f0] sm:$0xff]
    %v1264 = vld [vmem:[%s1200 + $0x1f8] sm:$0xff]
    %s1265 = scalar_lea.vmem %s5, 4
    %v1266 = vld [vmem:[%s1265] sm:$0xf]
    %v1268 = vlaneseq
    %v1269 = vshrl.u32 %v1268, 7
    %v1270 = vsub.s32 0, %v1269
    %v1271 = vrot.slane %v1266, %v1270
    %v1272 = vlaneseq
    %v1273 = vshrl.u32 %v1272, 7
    %v1274 = vsub.s32 1, %v1273
    %v1275 = vrot.slane %v1266, %v1274
    %v1276 = vlaneseq
    %v1277 = vshrl.u32 %v1276, 7
    %v1278 = vsub.s32 2, %v1277
    %v1279 = vrot.slane %v1266, %v1278
    %v1280 = vlaneseq
    %v1281 = vshrl.u32 %v1280, 7
    %v1282 = vsub.s32 3, %v1281
    %v1283 = vrot.slane %v1266, %v1282
    %v1352 = vunpack.c.l.b16 %v1201
    %v1353 = vunpack.c.h.b16 %v1201
    %v1354 = vunpack.c.l.b16 %v1202
    %v1355 = vunpack.c.h.b16 %v1202
    %v1356 = vunpack.c.l.b16 %v1203
    %v1357 = vunpack.c.h.b16 %v1203
    %v1358 = vunpack.c.l.b16 %v1204
    %v1359 = vunpack.c.h.b16 %v1204
    %v1360 = vunpack.c.l.b16 %v1205
    %v1361 = vunpack.c.h.b16 %v1205
    %v1362 = vunpack.c.l.b16 %v1206
    %v1363 = vunpack.c.h.b16 %v1206
    %v1364 = vunpack.c.l.b16 %v1207
    %v1365 = vunpack.c.h.b16 %v1207
    %v1366 = vunpack.c.l.b16 %v1208
    %v1367 = vunpack.c.h.b16 %v1208
    %v1368 = vunpack.c.l.b16 %v1209
    %v1369 = vunpack.c.h.b16 %v1209
    %v1370 = vunpack.c.l.b16 %v1210
    %v1371 = vunpack.c.h.b16 %v1210
    %v1372 = vunpack.c.l.b16 %v1211
    %v1373 = vunpack.c.h.b16 %v1211
    %v1374 = vunpack.c.l.b16 %v1212
    %v1375 = vunpack.c.h.b16 %v1212
    %v1376 = vunpack.c.l.b16 %v1213
    %v1377 = vunpack.c.h.b16 %v1213
    %v1378 = vunpack.c.l.b16 %v1214
    %v1379 = vunpack.c.h.b16 %v1214
    %v1380 = vunpack.c.l.b16 %v1215
    %v1381 = vunpack.c.h.b16 %v1215
    %v1382 = vunpack.c.l.b16 %v1216
    %v1383 = vunpack.c.h.b16 %v1216
    %v1384 = vunpack.c.l.b16 %v1217
    %v1385 = vunpack.c.h.b16 %v1217
    %v1386 = vunpack.c.l.b16 %v1218
    %v1387 = vunpack.c.h.b16 %v1218
    %v1388 = vunpack.c.l.b16 %v1219
    %v1389 = vunpack.c.h.b16 %v1219
    %v1390 = vunpack.c.l.b16 %v1220
    %v1391 = vunpack.c.h.b16 %v1220
    %v1392 = vunpack.c.l.b16 %v1221
    %v1393 = vunpack.c.h.b16 %v1221
    %v1394 = vunpack.c.l.b16 %v1222
    %v1395 = vunpack.c.h.b16 %v1222
    %v1396 = vunpack.c.l.b16 %v1223
    %v1397 = vunpack.c.h.b16 %v1223
    %v1398 = vunpack.c.l.b16 %v1224
    %v1399 = vunpack.c.h.b16 %v1224
    %v1400 = vunpack.c.l.b16 %v1225
    %v1401 = vunpack.c.h.b16 %v1225
    %v1402 = vunpack.c.l.b16 %v1226
    %v1403 = vunpack.c.h.b16 %v1226
    %v1404 = vunpack.c.l.b16 %v1227
    %v1405 = vunpack.c.h.b16 %v1227
    %v1406 = vunpack.c.l.b16 %v1228
    %v1407 = vunpack.c.h.b16 %v1228
    %v1408 = vunpack.c.l.b16 %v1229
    %v1409 = vunpack.c.h.b16 %v1229
    %v1410 = vunpack.c.l.b16 %v1230
    %v1411 = vunpack.c.h.b16 %v1230
    %v1412 = vunpack.c.l.b16 %v1231
    %v1413 = vunpack.c.h.b16 %v1231
    %v1414 = vunpack.c.l.b16 %v1232
    %v1415 = vunpack.c.h.b16 %v1232
    %v1416 = vunpack.c.l.b16 %v1233
    %v1417 = vunpack.c.h.b16 %v1233
    %v1418 = vunpack.c.l.b16 %v1234
    %v1419 = vunpack.c.h.b16 %v1234
    %v1420 = vunpack.c.l.b16 %v1235
    %v1421 = vunpack.c.h.b16 %v1235
    %v1422 = vunpack.c.l.b16 %v1236
    %v1423 = vunpack.c.h.b16 %v1236
    %v1424 = vunpack.c.l.b16 %v1237
    %v1425 = vunpack.c.h.b16 %v1237
    %v1426 = vunpack.c.l.b16 %v1238
    %v1427 = vunpack.c.h.b16 %v1238
    %v1428 = vunpack.c.l.b16 %v1239
    %v1429 = vunpack.c.h.b16 %v1239
    %v1430 = vunpack.c.l.b16 %v1240
    %v1431 = vunpack.c.h.b16 %v1240
    %v1432 = vunpack.c.l.b16 %v1241
    %v1433 = vunpack.c.h.b16 %v1241
    %v1434 = vunpack.c.l.b16 %v1242
    %v1435 = vunpack.c.h.b16 %v1242
    %v1436 = vunpack.c.l.b16 %v1243
    %v1437 = vunpack.c.h.b16 %v1243
    %v1438 = vunpack.c.l.b16 %v1244
    %v1439 = vunpack.c.h.b16 %v1244
    %v1440 = vunpack.c.l.b16 %v1245
    %v1441 = vunpack.c.h.b16 %v1245
    %v1442 = vunpack.c.l.b16 %v1246
    %v1443 = vunpack.c.h.b16 %v1246
    %v1444 = vunpack.c.l.b16 %v1247
    %v1445 = vunpack.c.h.b16 %v1247
    %v1446 = vunpack.c.l.b16 %v1248
    %v1447 = vunpack.c.h.b16 %v1248
    %v1448 = vunpack.c.l.b16 %v1249
    %v1449 = vunpack.c.h.b16 %v1249
    %v1450 = vunpack.c.l.b16 %v1250
    %v1451 = vunpack.c.h.b16 %v1250
    %v1452 = vunpack.c.l.b16 %v1251
    %v1453 = vunpack.c.h.b16 %v1251
    %v1454 = vunpack.c.l.b16 %v1252
    %v1455 = vunpack.c.h.b16 %v1252
    %v1456 = vunpack.c.l.b16 %v1253
    %v1457 = vunpack.c.h.b16 %v1253
    %v1458 = vunpack.c.l.b16 %v1254
    %v1459 = vunpack.c.h.b16 %v1254
    %v1460 = vunpack.c.l.b16 %v1255
    %v1461 = vunpack.c.h.b16 %v1255
    %v1462 = vunpack.c.l.b16 %v1256
    %v1463 = vunpack.c.h.b16 %v1256
    %v1464 = vunpack.c.l.b16 %v1257
    %v1465 = vunpack.c.h.b16 %v1257
    %v1466 = vunpack.c.l.b16 %v1258
    %v1467 = vunpack.c.h.b16 %v1258
    %v1468 = vunpack.c.l.b16 %v1259
    %v1469 = vunpack.c.h.b16 %v1259
    %v1470 = vunpack.c.l.b16 %v1260
    %v1471 = vunpack.c.h.b16 %v1260
    %v1472 = vunpack.c.l.b16 %v1261
    %v1473 = vunpack.c.h.b16 %v1261
    %v1474 = vunpack.c.l.b16 %v1262
    %v1475 = vunpack.c.h.b16 %v1262
    %v1476 = vunpack.c.l.b16 %v1263
    %v1477 = vunpack.c.h.b16 %v1263
    %v1478 = vunpack.c.l.b16 %v1264
    %v1479 = vunpack.c.h.b16 %v1264
    %v1480 = vpack.c.b16 %v1356, %v1352
    %v1481 = vpack.c.b16 %v1357, %v1353
    %v1482 = vpack.c.b16 %v1358, %v1354
    %v1483 = vpack.c.b16 %v1359, %v1355
    %v1484 = vpack.c.b16 %v1364, %v1360
    %v1485 = vpack.c.b16 %v1365, %v1361
    %v1486 = vpack.c.b16 %v1366, %v1362
    %v1487 = vpack.c.b16 %v1367, %v1363
    %v1488 = vpack.c.b16 %v1372, %v1368
    %v1489 = vpack.c.b16 %v1373, %v1369
    %v1490 = vpack.c.b16 %v1374, %v1370
    %v1491 = vpack.c.b16 %v1375, %v1371
    %v1492 = vpack.c.b16 %v1380, %v1376
    %v1493 = vpack.c.b16 %v1381, %v1377
    %v1494 = vpack.c.b16 %v1382, %v1378
    %v1495 = vpack.c.b16 %v1383, %v1379
    %v1496 = vpack.c.b16 %v1388, %v1384
    %v1497 = vpack.c.b16 %v1389, %v1385
    %v1498 = vpack.c.b16 %v1390, %v1386
    %v1499 = vpack.c.b16 %v1391, %v1387
    %v1500 = vpack.c.b16 %v1396, %v1392
    %v1501 = vpack.c.b16 %v1397, %v1393
    %v1502 = vpack.c.b16 %v1398, %v1394
    %v1503 = vpack.c.b16 %v1399, %v1395
    %v1504 = vpack.c.b16 %v1404, %v1400
    %v1505 = vpack.c.b16 %v1405, %v1401
    %v1506 = vpack.c.b16 %v1406, %v1402
    %v1507 = vpack.c.b16 %v1407, %v1403
    %v1508 = vpack.c.b16 %v1412, %v1408
    %v1509 = vpack.c.b16 %v1413, %v1409
    %v1510 = vpack.c.b16 %v1414, %v1410
    %v1511 = vpack.c.b16 %v1415, %v1411
    %v1512 = vpack.c.b16 %v1420, %v1416
    %v1513 = vpack.c.b16 %v1421, %v1417
    %v1514 = vpack.c.b16 %v1422, %v1418
    %v1515 = vpack.c.b16 %v1423, %v1419
    %v1516 = vpack.c.b16 %v1428, %v1424
    %v1517 = vpack.c.b16 %v1429, %v1425
    %v1518 = vpack.c.b16 %v1430, %v1426
    %v1519 = vpack.c.b16 %v1431, %v1427
    %v1520 = vpack.c.b16 %v1436, %v1432
    %v1521 = vpack.c.b16 %v1437, %v1433
    %v1522 = vpack.c.b16 %v1438, %v1434
    %v1523 = vpack.c.b16 %v1439, %v1435
    %v1524 = vpack.c.b16 %v1444, %v1440
    %v1525 = vpack.c.b16 %v1445, %v1441
    %v1526 = vpack.c.b16 %v1446, %v1442
    %v1527 = vpack.c.b16 %v1447, %v1443
    %v1528 = vpack.c.b16 %v1452, %v1448
    %v1529 = vpack.c.b16 %v1453, %v1449
    %v1530 = vpack.c.b16 %v1454, %v1450
    %v1531 = vpack.c.b16 %v1455, %v1451
    %v1532 = vpack.c.b16 %v1460, %v1456
    %v1533 = vpack.c.b16 %v1461, %v1457
    %v1534 = vpack.c.b16 %v1462, %v1458
    %v1535 = vpack.c.b16 %v1463, %v1459
    %v1536 = vpack.c.b16 %v1468, %v1464
    %v1537 = vpack.c.b16 %v1469, %v1465
    %v1538 = vpack.c.b16 %v1470, %v1466
    %v1539 = vpack.c.b16 %v1471, %v1467
    %v1540 = vpack.c.b16 %v1476, %v1472
    %v1541 = vpack.c.b16 %v1477, %v1473
    %v1542 = vpack.c.b16 %v1478, %v1474
    %v1543 = vpack.c.b16 %v1479, %v1475
    %1608 = vmatprep.subr.bf16.mxu0 %v1481
    %1609 = vmatpush1.bf16.msra.mxu0 %v1480
    %1610 = vmatprep.subr.bf16.mxu0 %v1485
    %1611 = vmatpush1.bf16.msra.mxu0 %v1484
    %1612 = vmatprep.subr.bf16.mxu0 %v1489
    %1613 = vmatpush1.bf16.msra.mxu0 %v1488
    %1614 = vmatprep.subr.bf16.mxu0 %v1493
    %1615 = vmatpush1.bf16.msra.mxu0 %v1492
    %1616 = vmatprep.subr.bf16.mxu0 %v1497
    %1617 = vmatpush1.bf16.msra.mxu0 %v1496
    %1618 = vmatprep.subr.bf16.mxu0 %v1501
    %1619 = vmatpush1.bf16.msra.mxu0 %v1500
    %1620 = vmatprep.subr.bf16.mxu0 %v1505
    %1621 = vmatpush1.bf16.msra.mxu0 %v1504
    %1622 = vmatprep.subr.bf16.mxu0 %v1509
    %1623 = vmatpush1.bf16.msra.mxu0 %v1508
    %1624 = vmatprep.subr.bf16.mxu0 %v1513
    %1625 = vmatpush1.bf16.msra.mxu0 %v1512
    %1626 = vmatprep.subr.bf16.mxu0 %v1517
    %1627 = vmatpush1.bf16.msra.mxu0 %v1516
    %1628 = vmatprep.subr.bf16.mxu0 %v1521
    %1629 = vmatpush1.bf16.msra.mxu0 %v1520
    %1630 = vmatprep.subr.bf16.mxu0 %v1525
    %1631 = vmatpush1.bf16.msra.mxu0 %v1524
    %1632 = vmatprep.subr.bf16.mxu0 %v1529
    %1633 = vmatpush1.bf16.msra.mxu0 %v1528
    %1634 = vmatprep.subr.bf16.mxu0 %v1533
    %1635 = vmatpush1.bf16.msra.mxu0 %v1532
    %1636 = vmatprep.subr.bf16.mxu0 %v1537
    %1637 = vmatpush1.bf16.msra.mxu0 %v1536
    %1638 = vmatprep.subr.bf16.mxu0 %v1541
    %1639 = vmatpush1.bf16.msra.mxu0 %v1540
    %1640 = vmatprep.mubr.bf16.mxu0 %v1199
    %1641 = vmatmul.mubr.bf16.gmra.mrb[0].mxu0 %v1198
    %v1642 = vpop.f32.mrb[0].mxu0
    %v1643 = vadd.f32 %v1271, %v1642
    %v1644 = vpop.f32.mrb[0].mxu0
    %v1645 = vadd.f32 %v1275, %v1644
    %v1646 = vpop.f32.mrb[0].mxu0
    %v1647 = vpop.f32.mrb[0].mxu0
    %1648 = vdwg.mxu0
    %1649 = vmatprep.subr.bf16.mxu0 %v1483
    %1650 = vmatpush1.bf16.msra.mxu0 %v1482
    %1651 = vmatprep.subr.bf16.mxu0 %v1487
    %1652 = vmatpush1.bf16.msra.mxu0 %v1486
    %1653 = vmatprep.subr.bf16.mxu0 %v1491
    %1654 = vmatpush1.bf16.msra.mxu0 %v1490
    %1655 = vmatprep.subr.bf16.mxu0 %v1495
    %1656 = vmatpush1.bf16.msra.mxu0 %v1494
    %1657 = vmatprep.subr.bf16.mxu0 %v1499
    %1658 = vmatpush1.bf16.msra.mxu0 %v1498
    %1659 = vmatprep.subr.bf16.mxu0 %v1503
    %1660 = vmatpush1.bf16.msra.mxu0 %v1502
    %1661 = vmatprep.subr.bf16.mxu0 %v1507
    %1662 = vmatpush1.bf16.msra.mxu0 %v1506
    %1663 = vmatprep.subr.bf16.mxu0 %v1511
    %1664 = vmatpush1.bf16.msra.mxu0 %v1510
    %1665 = vmatprep.subr.bf16.mxu0 %v1515
    %1666 = vmatpush1.bf16.msra.mxu0 %v1514
    %1667 = vmatprep.subr.bf16.mxu0 %v1519
    %1668 = vmatpush1.bf16.msra.mxu0 %v1518
    %1669 = vmatprep.subr.bf16.mxu0 %v1523
    %1670 = vmatpush1.bf16.msra.mxu0 %v1522
    %1671 = vmatprep.subr.bf16.mxu0 %v1527
    %1672 = vmatpush1.bf16.msra.mxu0 %v1526
    %1673 = vmatprep.subr.bf16.mxu0 %v1531
    %1674 = vmatpush1.bf16.msra.mxu0 %v1530
    %1675 = vmatprep.subr.bf16.mxu0 %v1535
    %1676 = vmatpush1.bf16.msra.mxu0 %v1534
    %1677 = vmatprep.subr.bf16.mxu0 %v1539
    %1678 = vmatpush1.bf16.msra.mxu0 %v1538
    %1679 = vmatprep.subr.bf16.mxu0 %v1543
    %1680 = vmatpush1.bf16.msra.mxu0 %v1542
    %1681 = vmatprep.mubr.bf16.mxu0 %v1199
    %1682 = vmatmul.mubr.bf16.gmra.mrb[0].mxu0 %v1198
    %v1683 = vpop.f32.mrb[0].mxu0
    %v1684 = vadd.f32 %v1279, %v1683
    %v1685 = vpop.f32.mrb[0].mxu0
    %v1686 = vadd.f32 %v1283, %v1685
    %v1687 = vpop.f32.mrb[0].mxu0
    %v1688 = vpop.f32.mrb[0].mxu0
    %1689 = vdwg.mxu0
    %v1690 = vmax.f32 %v1643, 0.0
    %v1691 = vmax.f32 %v1645, 0.0
    %s1692 = scalar_lea.vmem %s9, 2
    %v1693 = vld [vmem:[%s1692] sm:$0x3]
    %v1695 = vlaneseq
    %v1696 = vshrl.u32 %v1695, 7
    %v1697 = vsub.s32 0, %v1696
    %v1698 = vrot.slane %v1693, %v1697
    %v1699 = vlaneseq
    %v1700 = vshrl.u32 %v1699, 7
    %v1701 = vsub.s32 1, %v1700
    %v1702 = vrot.slane %v1693, %v1701
    %v1705 = vmul.f32 %v1690, %v1698
    %v1706 = vmul.f32 %v1691, %v1702
    %v1707 = vadd.f32 %v1705, %v1706
    %1708 = vadd.xlane.f32.xlu0 %v1707
    %v1709 = vpop.xlane.xlu0 %1708
    %s1710 = sld [smem:[#allocation8 + $0x80]]
    %v1711 = vstv %s1710
    %v1712 = vadd.f32 %v1709, %v1711
    %s1713 = scalar_lea.vmem %s6, 4
    %v1714 = vld [vmem:[%s1713] sm:$0xf]
    %v1717 = vunpack.c.l.s4 1983009808
    %v1718 = vunpack.c.0.s8 %v1717
    %v1719 = vlaneseq
    %v1720 = vshrl.u32 %v1719, 7
    %v1721 = vsub.s32 %v1718, %v1720
    %v1722 = vrot.slane %v1714, %v1721
    %v1723 = vcombine.high %v1722, %v1722
    %v1725 = vsel %vm720, %v1722, 0
    %v1728 = vsel %vm720, %v1723, 0
    %1730 = vmatprep.subr.bf16.mxu0 %v1728
    %1731 = vmatpush1.bf16.msra.mxu0 %v1725
    %1732 = vmatprep.subr.bf16.mxu0 0
    %1733 = vmatpush1.bf16.msra.mxu0 0
    %1734 = vmatprep.subr.bf16.mxu0 0
    %1735 = vmatpush1.bf16.msra.mxu0 0
    %1736 = vmatprep.subr.bf16.mxu0 0
    %1737 = vmatpush1.bf16.msra.mxu0 0
    %1738 = vmatprep.subr.bf16.mxu0 0
    %1739 = vmatpush1.bf16.msra.mxu0 0
    %1740 = vmatprep.subr.bf16.mxu0 0
    %1741 = vmatpush1.bf16.msra.mxu0 0
    %1742 = vmatprep.subr.bf16.mxu0 0
    %1743 = vmatpush1.bf16.msra.mxu0 0
    %1744 = vmatprep.subr.bf16.mxu0 0
    %1745 = vmatpush1.bf16.msra.mxu0 0
    %1746 = vmatprep.subr.bf16.mxu0 0
    %1747 = vmatpush1.bf16.msra.mxu0 0
    %1748 = vmatprep.subr.bf16.mxu0 0
    %1749 = vmatpush1.bf16.msra.mxu0 0
    %1750 = vmatprep.subr.bf16.mxu0 0
    %1751 = vmatpush1.bf16.msra.mxu0 0
    %1752 = vmatprep.subr.bf16.mxu0 0
    %1753 = vmatpush1.bf16.msra.mxu0 0
    %1754 = vmatprep.subr.bf16.mxu0 0
    %1755 = vmatpush1.bf16.msra.mxu0 0
    %1756 = vmatprep.subr.bf16.mxu0 0
    %1757 = vmatpush1.bf16.msra.mxu0 0
    %1758 = vmatprep.subr.bf16.mxu0 0
    %1759 = vmatpush1.bf16.msra.mxu0 0
    %1760 = vmatprep.subr.bf16.mxu0 0
    %1761 = vmatpush1.bf16.msra.mxu0 0
    %1762 = vmatprep.mubr.bf16.mxu0 0
    %1763 = vmatmul.mubr.bf16.gmra.mrb[0].mxu0 %v712
    %v1764 = vpop.f32.mrb[0].mxu0
    %v1765 = vadd.f32 0.0, %v1764
    %v1766 = vpop.f32.mrb[0].mxu0
    %v1767 = vadd.f32 0.0, %v1766
    %v1768 = vpop.f32.mrb[0].mxu0
    %v1769 = vadd.f32 0.0, %v1768
    %v1770 = vpop.f32.mrb[0].mxu0
    %v1771 = vadd.f32 0.0, %v1770
    %1772 = vmatprep.mubr.bf16.mxu0 0
    %1773 = vmatmul.mubr.bf16.gmra.mrb[0].mxu0 %v715
    %v1774 = vpop.f32.mrb[0].mxu0
    %v1775 = vadd.f32 0.0, %v1774
    %v1776 = vpop.f32.mrb[0].mxu0
    %v1777 = vadd.f32 0.0, %v1776
    %v1778 = vpop.f32.mrb[0].mxu0
    %v1779 = vadd.f32 0.0, %v1778
    %v1780 = vpop.f32.mrb[0].mxu0
    %v1781 = vadd.f32 0.0, %v1780
    %1782 = vmatprep.mubr.bf16.mxu0 0
    %1783 = vmatmul.mubr.bf16.gmra.mrb[0].mxu0 %v718
    %v1784 = vpop.f32.mrb[0].mxu0
    %v1785 = vadd.f32 0.0, %v1784
    %v1786 = vpop.f32.mrb[0].mxu0
    %v1787 = vadd.f32 0.0, %v1786
    %v1788 = vpop.f32.mrb[0].mxu0
    %v1789 = vpop.f32.mrb[0].mxu0
    %1790 = vdwg.mxu0
    %v1791 = vadd.f32 %v1684, %v1765
    %v1792 = vadd.f32 %v1686, %v1767
    %v1793 = vadd.f32 %v1684, %v1769
    %v1794 = vadd.f32 %v1686, %v1771
    %v1795 = vadd.f32 %v1684, %v1775
    %v1796 = vadd.f32 %v1686, %v1777
    %v1797 = vadd.f32 %v1684, %v1779
    %v1798 = vadd.f32 %v1686, %v1781
    %v1799 = vadd.f32 %v1684, %v1785
    %v1800 = vadd.f32 %v1686, %v1787
    %v1801 = vmax.f32 %v1791, 0.0
    %v1802 = vmax.f32 %v1792, 0.0
    %v1803 = vmax.f32 %v1793, 0.0
    %v1804 = vmax.f32 %v1794, 0.0
    %v1805 = vmax.f32 %v1795, 0.0
    %v1806 = vmax.f32 %v1796, 0.0
    %v1807 = vmax.f32 %v1797, 0.0
    %v1808 = vmax.f32 %v1798, 0.0
    %v1809 = vmax.f32 %v1799, 0.0
    %v1810 = vmax.f32 %v1800, 0.0
    %v1811 = vpack.c.bf16 %v1803, %v1801
    %v1812 = vpack.c.bf16 %v1804, %v1802
    %v1813 = vpack.c.bf16 %v1807, %v1805
    %v1814 = vpack.c.bf16 %v1808, %v1806
    %v1815 = vpack.c.bf16 %v1809, %v1809
    %v1816 = vpack.c.bf16 %v1810, %v1810
    %s1817 = scalar_lea.vmem [#allocation7], 256
    %v1818 = vld [vmem:[%s1817] sm:$0xff]
    %v1819 = vld [vmem:[%s1817 + $0x8] sm:$0xff]
    %v1820 = vld [vmem:[%s1817 + $0x10] sm:$0xff]
    %v1821 = vld [vmem:[%s1817 + $0x18] sm:$0xff]
    %v1822 = vld [vmem:[%s1817 + $0x20] sm:$0xff]
    %v1823 = vld [vmem:[%s1817 + $0x28] sm:$0xff]
    %v1824 = vld [vmem:[%s1817 + $0x30] sm:$0xff]
    %v1825 = vld [vmem:[%s1817 + $0x38] sm:$0xff]
    %v1826 = vld [vmem:[%s1817 + $0x40] sm:$0xff]
    %v1827 = vld [vmem:[%s1817 + $0x48] sm:$0xff]
    %v1828 = vld [vmem:[%s1817 + $0x50] sm:$0xff]
    %v1829 = vld [vmem:[%s1817 + $0x58] sm:$0xff]
    %v1830 = vld [vmem:[%s1817 + $0x60] sm:$0xff]
    %v1831 = vld [vmem:[%s1817 + $0x68] sm:$0xff]
    %v1832 = vld [vmem:[%s1817 + $0x70] sm:$0xff]
    %v1833 = vld [vmem:[%s1817 + $0x78] sm:$0xff]
    %v1834 = vld [vmem:[%s1817 + $0x80] sm:$0xff]
    %v1835 = vld [vmem:[%s1817 + $0x88] sm:$0xff]
    %v1836 = vld [vmem:[%s1817 + $0x90] sm:$0xff]
    %v1837 = vld [vmem:[%s1817 + $0x98] sm:$0xff]
    %v1838 = vld [vmem:[%s1817 + $0xa0] sm:$0xff]
    %v1839 = vld [vmem:[%s1817 + $0xa8] sm:$0xff]
    %v1840 = vld [vmem:[%s1817 + $0xb0] sm:$0xff]
    %v1841 = vld [vmem:[%s1817 + $0xb8] sm:$0xff]
    %v1842 = vld [vmem:[%s1817 + $0xc0] sm:$0xff]
    %v1843 = vld [vmem:[%s1817 + $0xc8] sm:$0xff]
    %v1844 = vld [vmem:[%s1817 + $0xd0] sm:$0xff]
    %v1845 = vld [vmem:[%s1817 + $0xd8] sm:$0xff]
    %v1846 = vld [vmem:[%s1817 + $0xe0] sm:$0xff]
    %v1847 = vld [vmem:[%s1817 + $0xe8] sm:$0xff]
    %v1848 = vld [vmem:[%s1817 + $0xf0] sm:$0xff]
    %v1849 = vld [vmem:[%s1817 + $0xf8] sm:$0xff]
    %s1850 = scalar_lea.vmem %s8, 2
    %v1851 = vld [vmem:[%s1850] sm:$0x3]
    %v1853 = vlaneseq
    %v1854 = vshrl.u32 %v1853, 7
    %v1855 = vsub.s32 0, %v1854
    %v1856 = vrot.slane %v1851, %v1855
    %v1857 = vlaneseq
    %v1858 = vshrl.u32 %v1857, 7
    %v1859 = vsub.s32 1, %v1858
    %v1860 = vrot.slane %v1851, %v1859
    %v1895 = vunpack.c.l.b16 %v1818
    %v1896 = vunpack.c.h.b16 %v1818
    %v1897 = vunpack.c.l.b16 %v1819
    %v1898 = vunpack.c.h.b16 %v1819
    %v1899 = vunpack.c.l.b16 %v1820
    %v1900 = vunpack.c.h.b16 %v1820
    %v1901 = vunpack.c.l.b16 %v1821
    %v1902 = vunpack.c.h.b16 %v1821
    %v1903 = vunpack.c.l.b16 %v1822
    %v1904 = vunpack.c.h.b16 %v1822
    %v1905 = vunpack.c.l.b16 %v1823
    %v1906 = vunpack.c.h.b16 %v1823
    %v1907 = vunpack.c.l.b16 %v1824
    %v1908 = vunpack.c.h.b16 %v1824
    %v1909 = vunpack.c.l.b16 %v1825
    %v1910 = vunpack.c.h.b16 %v1825
    %v1911 = vunpack.c.l.b16 %v1826
    %v1912 = vunpack.c.h.b16 %v1826
    %v1913 = vunpack.c.l.b16 %v1827
    %v1914 = vunpack.c.h.b16 %v1827
    %v1915 = vunpack.c.l.b16 %v1828
    %v1916 = vunpack.c.h.b16 %v1828
    %v1917 = vunpack.c.l.b16 %v1829
    %v1918 = vunpack.c.h.b16 %v1829
    %v1919 = vunpack.c.l.b16 %v1830
    %v1920 = vunpack.c.h.b16 %v1830
    %v1921 = vunpack.c.l.b16 %v1831
    %v1922 = vunpack.c.h.b16 %v1831
    %v1923 = vunpack.c.l.b16 %v1832
    %v1924 = vunpack.c.h.b16 %v1832
    %v1925 = vunpack.c.l.b16 %v1833
    %v1926 = vunpack.c.h.b16 %v1833
    %v1927 = vunpack.c.l.b16 %v1834
    %v1928 = vunpack.c.h.b16 %v1834
    %v1929 = vunpack.c.l.b16 %v1835
    %v1930 = vunpack.c.h.b16 %v1835
    %v1931 = vunpack.c.l.b16 %v1836
    %v1932 = vunpack.c.h.b16 %v1836
    %v1933 = vunpack.c.l.b16 %v1837
    %v1934 = vunpack.c.h.b16 %v1837
    %v1935 = vunpack.c.l.b16 %v1838
    %v1936 = vunpack.c.h.b16 %v1838
    %v1937 = vunpack.c.l.b16 %v1839
    %v1938 = vunpack.c.h.b16 %v1839
    %v1939 = vunpack.c.l.b16 %v1840
    %v1940 = vunpack.c.h.b16 %v1840
    %v1941 = vunpack.c.l.b16 %v1841
    %v1942 = vunpack.c.h.b16 %v1841
    %v1943 = vunpack.c.l.b16 %v1842
    %v1944 = vunpack.c.h.b16 %v1842
    %v1945 = vunpack.c.l.b16 %v1843
    %v1946 = vunpack.c.h.b16 %v1843
    %v1947 = vunpack.c.l.b16 %v1844
    %v1948 = vunpack.c.h.b16 %v1844
    %v1949 = vunpack.c.l.b16 %v1845
    %v1950 = vunpack.c.h.b16 %v1845
    %v1951 = vunpack.c.l.b16 %v1846
    %v1952 = vunpack.c.h.b16 %v1846
    %v1953 = vunpack.c.l.b16 %v1847
    %v1954 = vunpack.c.h.b16 %v1847
    %v1955 = vunpack.c.l.b16 %v1848
    %v1956 = vunpack.c.h.b16 %v1848
    %v1957 = vunpack.c.l.b16 %v1849
    %v1958 = vunpack.c.h.b16 %v1849
    %v1959 = vpack.c.b16 %v1897, %v1895
    %v1960 = vpack.c.b16 %v1898, %v1896
    %v1961 = vpack.c.b16 %v1901, %v1899
    %v1962 = vpack.c.b16 %v1902, %v1900
    %v1963 = vpack.c.b16 %v1905, %v1903
    %v1964 = vpack.c.b16 %v1906, %v1904
    %v1965 = vpack.c.b16 %v1909, %v1907
    %v1966 = vpack.c.b16 %v1910, %v1908
    %v1967 = vpack.c.b16 %v1913, %v1911
    %v1968 = vpack.c.b16 %v1914, %v1912
    %v1969 = vpack.c.b16 %v1917, %v1915
    %v1970 = vpack.c.b16 %v1918, %v1916
    %v1971 = vpack.c.b16 %v1921, %v1919
    %v1972 = vpack.c.b16 %v1922, %v1920
    %v1973 = vpack.c.b16 %v1925, %v1923
    %v1974 = vpack.c.b16 %v1926, %v1924
    %v1975 = vpack.c.b16 %v1929, %v1927
    %v1976 = vpack.c.b16 %v1930, %v1928
    %v1977 = vpack.c.b16 %v1933, %v1931
    %v1978 = vpack.c.b16 %v1934, %v1932
    %v1979 = vpack.c.b16 %v1937, %v1935
    %v1980 = vpack.c.b16 %v1938, %v1936
    %v1981 = vpack.c.b16 %v1941, %v1939
    %v1982 = vpack.c.b16 %v1942, %v1940
    %v1983 = vpack.c.b16 %v1945, %v1943
    %v1984 = vpack.c.b16 %v1946, %v1944
    %v1985 = vpack.c.b16 %v1949, %v1947
    %v1986 = vpack.c.b16 %v1950, %v1948
    %v1987 = vpack.c.b16 %v1953, %v1951
    %v1988 = vpack.c.b16 %v1954, %v1952
    %v1989 = vpack.c.b16 %v1957, %v1955
    %v1990 = vpack.c.b16 %v1958, %v1956
    %2023 = vmatprep.subr.bf16.mxu0 %v1960
    %2024 = vmatpush1.bf16.msra.mxu0 %v1959
    %2025 = vmatprep.subr.bf16.mxu0 %v1962
    %2026 = vmatpush1.bf16.msra.mxu0 %v1961
    %2027 = vmatprep.subr.bf16.mxu0 %v1964
    %2028 = vmatpush1.bf16.msra.mxu0 %v1963
    %2029 = vmatprep.subr.bf16.mxu0 %v1966
    %2030 = vmatpush1.bf16.msra.mxu0 %v1965
    %2031 = vmatprep.subr.bf16.mxu0 %v1968
    %2032 = vmatpush1.bf16.msra.mxu0 %v1967
    %2033 = vmatprep.subr.bf16.mxu0 %v1970
    %2034 = vmatpush1.bf16.msra.mxu0 %v1969
    %2035 = vmatprep.subr.bf16.mxu0 %v1972
    %2036 = vmatpush1.bf16.msra.mxu0 %v1971
    %2037 = vmatprep.subr.bf16.mxu0 %v1974
    %2038 = vmatpush1.bf16.msra.mxu0 %v1973
    %2039 = vmatprep.subr.bf16.mxu0 %v1976
    %2040 = vmatpush1.bf16.msra.mxu0 %v1975
    %2041 = vmatprep.subr.bf16.mxu0 %v1978
    %2042 = vmatpush1.bf16.msra.mxu0 %v1977
    %2043 = vmatprep.subr.bf16.mxu0 %v1980
    %2044 = vmatpush1.bf16.msra.mxu0 %v1979
    %2045 = vmatprep.subr.bf16.mxu0 %v1982
    %2046 = vmatpush1.bf16.msra.mxu0 %v1981
    %2047 = vmatprep.subr.bf16.mxu0 %v1984
    %2048 = vmatpush1.bf16.msra.mxu0 %v1983
    %2049 = vmatprep.subr.bf16.mxu0 %v1986
    %2050 = vmatpush1.bf16.msra.mxu0 %v1985
    %2051 = vmatprep.subr.bf16.mxu0 %v1988
    %2052 = vmatpush1.bf16.msra.mxu0 %v1987
    %2053 = vmatprep.subr.bf16.mxu0 %v1990
    %2054 = vmatpush1.bf16.msra.mxu0 %v1989
    %2055 = vmatprep.mubr.bf16.mxu0 %v1812
    %2056 = vmatmul.mubr.bf16.gmra.mrb[0].mxu0 %v1811
    %v2057 = vpop.f32.mrb[0].mxu0
    %v2058 = vadd.f32 %v1856, %v2057
    %v2059 = vpop.f32.mrb[0].mxu0
    %v2060 = vadd.f32 %v1860, %v2059
    %v2061 = vpop.f32.mrb[0].mxu0
    %v2062 = vadd.f32 %v1856, %v2061
    %v2063 = vpop.f32.mrb[0].mxu0
    %v2064 = vadd.f32 %v1860, %v2063
    %2065 = vmatprep.mubr.bf16.mxu0 %v1814
    %2066 = vmatmul.mubr.bf16.gmra.mrb[0].mxu0 %v1813
    %v2067 = vpop.f32.mrb[0].mxu0
    %v2068 = vadd.f32 %v1856, %v2067
    %v2069 = vpop.f32.mrb[0].mxu0
    %v2070 = vadd.f32 %v1860, %v2069
    %v2071 = vpop.f32.mrb[0].mxu0
    %v2072 = vadd.f32 %v1856, %v2071
    %v2073 = vpop.f32.mrb[0].mxu0
    %v2074 = vadd.f32 %v1860, %v2073
    %2075 = vmatprep.mubr.bf16.mxu0 %v1816
    %2076 = vmatmul.mubr.bf16.gmra.mrb[0].mxu0 %v1815
    %v2077 = vpop.f32.mrb[0].mxu0
    %v2078 = vadd.f32 %v1856, %v2077
    %v2079 = vpop.f32.mrb[0].mxu0
    %v2080 = vadd.f32 %v1860, %v2079
    %v2081 = vpop.f32.mrb[0].mxu0
    %v2082 = vpop.f32.mrb[0].mxu0
    %2083 = vdwg.mxu0
    %v2084 = vmax.f32 %v2058, 0.0
    %v2085 = vmax.f32 %v2060, 0.0
    %v2086 = vmax.f32 %v2062, 0.0
    %v2087 = vmax.f32 %v2064, 0.0
    %v2088 = vmax.f32 %v2068, 0.0
    %v2089 = vmax.f32 %v2070, 0.0
    %v2090 = vmax.f32 %v2072, 0.0
    %v2091 = vmax.f32 %v2074, 0.0
    %v2092 = vmax.f32 %v2078, 0.0
    %v2093 = vmax.f32 %v2080, 0.0
    %s2094 = scalar_lea.vmem %s10, 2
    %v2095 = vld [vmem:[%s2094] sm:$0x3]
    %v2097 = vlaneseq
    %v2098 = vshrl.u32 %v2097, 7
    %v2099 = vsub.s32 0, %v2098
    %v2100 = vrot.slane %v2095, %v2099
    %v2101 = vlaneseq
    %v2102 = vshrl.u32 %v2101, 7
    %v2103 = vsub.s32 1, %v2102
    %v2104 = vrot.slane %v2095, %v2103
    %v2107 = vmul.f32 %v2084, %v2100
    %v2108 = vmul.f32 %v2085, %v2104
    %v2109 = vadd.f32 %v2107, %v2108
    %2110 = vadd.xlane.f32.xlu0 %v2109
    %v2111 = vpop.xlane.xlu0 %2110
    %s2112 = sld [smem:[#allocation8 + $0x81]]
    %v2113 = vstv %s2112
    %v2114 = vadd.f32 %v2111, %v2113
    %v2115 = vadd.f32 %v2114, %v1712
    %s2116 = scalar_lea.vmem %s12, 8
    %2117 = vst.msk [vmem:[%s2116] sm:$0xff] %vm1110, %v2115
    %v2118 = vadd.f32 %v2086, %v2088
    %v2119 = vadd.f32 %v2087, %v2089
    %v2120 = vadd.f32 %v2118, %v2090
    %v2121 = vadd.f32 %v2119, %v2091
    %v2122 = vadd.f32 %v2120, %v2092
    %v2123 = vadd.f32 %v2121, %v2093
    %v2124 = vmul.f32 %v2122, 0.25
    %v2125 = vmul.f32 %v2123, 0.25
    %v2126 = vmul.f32 %v2124, %v2100
    %v2127 = vmul.f32 %v2125, %v2104
    %v2128 = vadd.f32 %v2126, %v2127
    %2129 = vadd.xlane.f32.xlu0 %v2128
    %v2130 = vpop.xlane.xlu0 %2129
    %s2131 = sld [smem:[#allocation8 + $0x81]]
    %v2132 = vstv %s2131
    %v2133 = vadd.f32 %v2130, %v2132
    %s2134 = scalar_lea.vmem %s13, 8
    %2135 = vst.msk [vmem:[%s2134] sm:$0xff] %vm1110, %v2133
    // Predicated region
    $region66: #{tpu_custom_call.1} parent=1 // pred_check
      _
    $region67: #{tpu_custom_call.1} parent=1 // pred_check_branch
      %2137 = sbr.rel (0) target = $region69
    $region68: #{tpu_custom_call.1} parent=1 // pred_region
      _
    $region69: #{tpu_custom_call.1} parent=1 // pred_fallthru
      _
    // Predicated region
    $region70: #{tpu_custom_call.1} parent=1 // pred_check
      _
    $region71: #{tpu_custom_call.1} parent=1 // pred_check_branch
      %2139 = sbr.rel (0) target = $region73
    $region72: #{tpu_custom_call.1} parent=1 // pred_region
      _
    $region73: #{tpu_custom_call.1} parent=1 // pred_fallthru
      _
    // Predicated region
    $region74: #{tpu_custom_call.1} parent=1 // pred_check
      _
    $region75: #{tpu_custom_call.1} parent=1 // pred_check_branch
      %2141 = sbr.rel (0) target = $region77
    $region76: #{tpu_custom_call.1} parent=1 // pred_region
      _
    $region77: #{tpu_custom_call.1} parent=1 // pred_fallthru
      _
    // Predicated region
    $region78: #{tpu_custom_call.1} parent=1 // pred_check
      _
    $region79: #{tpu_custom_call.1} parent=1 // pred_check_branch
      %2143 = sbr.rel (0) target = $region81
    $region80: #{tpu_custom_call.1} parent=1 // pred_region
      _
    $region81: #{tpu_custom_call.1} parent=1 // pred_fallthru
      _
    %2144 = vsyncpa [#allocation3], 1
    %2145 = vsyncpa [#allocation6], 1
    %2146 = vsyncpa [#allocation4], 1

</llo_original>
